<compile_context>
chip_gen: v6e
topology: v6e:2x2x1
jax: 0.10.0
libtpu: 0.0.40
codegen_flags: <defaults>
</compile_context>

<pallas_src>
import functools

import jax
import jax.numpy as jnp
from jax import lax
from jax.experimental import pallas as pl
from jax.experimental.pallas import tpu as pltpu


# ----------------------------- Pallas kernel --------------------------------
def gclstm_kernel(x_ref, lhat_ref, w_in_ref, theta_ref, bias_ref,
                  hseq_ref, h_scr, c_scr, prex_scr, *, K, D, TC):
    chunk = pl.program_id(0)
    N = h_scr.shape[0]

    # H = C = 0 at the first snapshot (module initializes hidden/cell state with zeros).
    @pl.when(chunk == 0)
    def _():
        h_scr[...] = jnp.zeros_like(h_scr)
        c_scr[...] = jnp.zeros_like(c_scr)

    # Loop-invariant loads, hoisted (JAX does not CSE VMEM loads / broadcast_in_dim in the loop).
    w_in = w_in_ref[...]                                    # (F, 4D)   bf16
    theta = theta_ref[...]                                  # (K*D, 4D) bf16
    bias = jnp.broadcast_to(bias_ref[...], (N, 4 * D))      # (N, 4D)   f32

    # Whole-chunk input projection: one (TC*N, F) @ (F, 4D) matmul instead of TC tiny 16-row ones.
    prex_scr[...] = jnp.dot(x_ref[...], w_in, preferred_element_type=jnp.float32)

    def step(s, carry):
        lhat = lhat_ref[s]                                  # (N, N) bf16
        H = h_scr[...]                                      # (N, D) f32 state
        C = c_scr[...]                                      # (N, D) f32 state

        # Chebyshev terms T_0..T_{K-1} of L_hat applied to H (f32 state, bf16 MXU operands),
        # then ONE wide (N, K*D) @ (K*D, 4D) contraction for all four gates' conv terms.
        tks = [H]
        if K > 1:
            t1 = jnp.dot(lhat, H.astype(jnp.bfloat16), preferred_element_type=jnp.float32)
            tks.append(t1)
            tp2, tp1 = H, t1
            for _ in range(2, K):
                tn = 2.0 * jnp.dot(lhat, tp1.astype(jnp.bfloat16),
                                   preferred_element_type=jnp.float32) - tp2
                tks.append(tn)
                tp2, tp1 = tp1, tn
        tx = (jnp.concatenate(tks, axis=-1) if K > 1 else tks[0]).astype(jnp.bfloat16)

        off = s * N
        if N % 8 == 0:
            off = pl.multiple_of(off, 8)
        pre = (prex_scr[pl.ds(off, N), :]
               + jnp.dot(tx, theta, preferred_element_type=jnp.float32)
               + bias)                                      # (N, 4D) f32 fused pre-activation

        # Slice fused pre-activation into i / f / c / o (all gate convs use the OLD H, as in torch).
        i_g = jax.nn.sigmoid(pre[:, 0 * D:1 * D])
        f_g = jax.nn.sigmoid(pre[:, 1 * D:2 * D])
        c_t = jnp.tanh(pre[:, 2 * D:3 * D])
        o_g = jax.nn.sigmoid(pre[:, 3 * D:4 * D])

        c_new = f_g * C + i_g * c_t
        h_new = o_g * jnp.tanh(c_new)

        h_scr[...] = h_new
        c_scr[...] = c_new
        hseq_ref[s] = h_new
        return carry

    lax.fori_loop(0, TC, step, 0, unroll=(TC <= 8))


# ----------------------------- wrapper / fusion ------------------------------
def fuse_params(wpool, wx, bx, theta, bconv):
    """Gate-stack (i, f, c, o) along the output dim, fold the pool layer, pre-add biases.

    Exact same math as the unfused PyTorch forward up to fp reassociation.
    """
    K, D = theta.shape[1], theta.shape[-1]
    wx_f = jnp.concatenate([wx[g] for g in range(4)], axis=-1)                  # (D, 4D)
    w_in = jnp.dot(wpool, wx_f)                                                 # (F, 4D)
    theta_f = jnp.concatenate([theta[g] for g in range(4)], axis=-1)            # (K, D, 4D)
    theta_flat = theta_f.reshape(K * D, 4 * D)                                  # rows = (k, d)
    bias_f = jnp.concatenate([bx[g] + bconv[g] for g in range(4)], axis=-1)     # (1, 4D)
    return w_in, theta_flat, bias_f


def _plan_vmem(T, N, F, D, K):
    """Pick a time-chunk size TC and a scoped-VMEM limit, generation aware."""
    try:
        vmem_cap = int(pltpu.get_tpu_info().vmem_capacity_bytes)   # 128 MiB v5e/v6e, 64 MiB v7x
    except Exception:
        vmem_cap = 64 << 20                                        # conservative fallback (v7x)
    limit_cap = (vmem_cap * 7) // 8      # headroom for compiler scratch / semaphores / spills
    budget = (vmem_cap * 5) // 8         # target for our own allocations

    def footprint(tc):
        io_blocks = 2 * (tc * N * F * 2          # X chunk (bf16), double-buffered
                         + tc * N * N * 2        # Lhat chunk (bf16), double-buffered
                         + tc * N * D * 4)       # output chunk (f32), double-buffered
        weights = 2 * ((F * 4 * D + K * D * 4 * D) * 2 + 4 * D * 4)   # const-index, still 2-buffered
        scratch = 2 * N * D * 4 + tc * N * 4 * D * 4                  # H/C + chunk X-projection
        return io_blocks + weights + scratch

    tc = T
    while tc > 1 and (T % tc != 0 or footprint(tc) > budget):
        tc -= 1
    est = footprint(tc)
    # Shrink TC (above) rather than clamping the limit below the allocation.
    vmem_limit = int(min(limit_cap, max(est + est // 4 + (4 << 20), 32 << 20)))
    return tc, vmem_limit


def gclstm_forward(x_seq, lhat_seq, wpool, wx, bx, theta, bconv):
    T, N, F = x_seq.shape
    D = wpool.shape[1]
    K = theta.shape[1]

    w_in, theta_flat, bias_f = fuse_params(wpool, wx, bx, theta, bconv)

    # bf16 MXU operands (f32 accumulation via preferred_element_type); bias & all state stay f32.
    x2 = x_seq.reshape(T * N, F).astype(jnp.bfloat16)        # also halves the X DMA stream
    lhat_b = lhat_seq.astype(jnp.bfloat16)                   # halves the dominant Lhat DMA stream
    w_in = w_in.astype(jnp.bfloat16)
    theta_flat = theta_flat.astype(jnp.bfloat16)

    TC, vmem_limit = _plan_vmem(T, N, F, D, K)
    n_chunks = T // TC

    # TODO(synk): for very large N the dense (N, N) Laplacian block should stay in HBM
    # (memory_space=pl.ANY) and be streamed as row panels via pltpu.make_async_copy.
    # TODO(synk): for batches of independent sequences add a leading 'parallel' grid axis so the
    # second TensorCore on v7x is used.
    kernel = functools.partial(gclstm_kernel, K=K, D=D, TC=TC)
    h_seq = pl.pallas_call(
        kernel,
        out_shape=jax.ShapeDtypeStruct((T, N, D), jnp.float32),
        grid_spec=pltpu.PrefetchScalarGridSpec(
            num_scalar_prefetch=0,
            grid=(n_chunks,),
            in_specs=[
                pl.BlockSpec((TC * N, F), lambda c: (c, 0)),       # X chunk, pre-flattened (bf16)
                pl.BlockSpec((TC, N, N), lambda c: (c, 0, 0)),     # L_hat chunk (bf16)
                pl.BlockSpec((F, 4 * D), lambda c: (0, 0)),        # fused input weights (pool folded)
                pl.BlockSpec((K * D, 4 * D), lambda c: (0, 0)),    # gate-stacked ChebConv thetas
                pl.BlockSpec((1, 4 * D), lambda c: (0, 0)),        # fused biases (b_g + b_conv_g), f32
            ],
            out_specs=pl.BlockSpec((TC, N, D), lambda c: (c, 0, 0)),
            scratch_shapes=[
                pltpu.VMEM((N, D), jnp.float32),           # H carried across time chunks
                pltpu.VMEM((N, D), jnp.float32),           # C carried across time chunks
                pltpu.VMEM((TC * N, 4 * D), jnp.float32),  # whole-chunk fused X projection
            ],
        ),
        compiler_params=pltpu.CompilerParams(
            dimension_semantics=("arbitrary",),            # time recurrence is sequential
            vmem_limit_bytes=vmem_limit,
        ),
    )(x2, lhat_b, w_in, theta_flat, bias_f)

    # torch.stack(output, dim=1)  ->  [N, T, D]
    # TODO(synk): emit the [N, T, D] layout directly from the kernel (per-chunk transposed store)
    # to drop this extra HBM pass over the output.
    return jnp.transpose(h_seq, (1, 0, 2))


# ----------------------------- JAX glue / setup ------------------------------
def build_lhat(edge_index, num_nodes):
    """Dense scaled Laplacian used by torch_geometric ChebConv with sym norm, lambda_max=2,
    edge_weight = 1: L_hat[i, j] = -sum_{edges (j -> i)} deg(j)^{-1/2} deg(i)^{-1/2}.
    NOTE: degree is out-degree (scatter over source nodes), matching PyG get_laplacian; for
    directed/asymmetric edge lists verify against the exact PyG version in use."""
    row, col = edge_index[0], edge_index[1]
    w = jnp.ones(row.shape[0], jnp.float32)
    deg = jnp.zeros((num_nodes,), jnp.float32).at[row].add(w)
    dinv = jnp.where(deg > 0, jax.lax.rsqrt(deg), 0.0)
    norm_w = -dinv[row] * w * dinv[col]
    lhat = jnp.zeros((num_nodes, num_nodes), jnp.float32).at[col, row].add(norm_w)
    return lhat


def glorot(key, shape):
    fan_in, fan_out = shape[-2], shape[-1]
    a = (6.0 / (fan_in + fan_out)) ** 0.5
    return jax.random.uniform(key, shape, jnp.float32, -a, a)


def reference_forward(x_seq, lhat_seq, wpool, wx, bx, theta, bconv):
    """Pure-JAX f32 reference replicating the unfused PyTorch forward semantics."""
    T, N, _ = x_seq.shape
    D = wpool.shape[1]
    K = theta.shape[1]
    H = jnp.zeros((N, D), jnp.float32)
    C = jnp.zeros((N, D), jnp.float32)
    outs = []
    for t in range(T):
        xp = x_seq[t] @ wpool
        lhat = lhat_seq[t]
        Tx = [H]
        if K > 1:
            Tx.append(lhat @ H)
        for _ in range(2, K):
            Tx.append(2.0 * lhat @ Tx[-1] - Tx[-2])

        def gate(g):
            acc = xp @ wx[g]
            for k in range(K):
                acc = acc + Tx[k] @ theta[g, k]
            return acc + bconv[g] + bx[g]

        i = jax.nn.sigmoid(gate(0))
        f = jax.nn.sigmoid(gate(1))
        tc = jnp.tanh(gate(2))
        C = f * C + i * tc
        o = jax.nn.sigmoid(gate(3))
        H = o * jnp.tanh(C)
        outs.append(H)
    return jnp.stack(outs, axis=1)   # [N, T, D]


if __name__ == "__main__":
    # Small shapes consistent with the module:
    num_nodes, num_features = 16, 8
    in_channels = 32           # = out_channels
    time_length = 4
    K = 3
    num_edges = 48

    key = jax.random.PRNGKey(0)
    keys = jax.random.split(key, 12)

    # Synthetic dynamic graphs: per-timestep node features + edge_index (edge weights are all 1).
    x_seq = jax.random.normal(keys[0], (time_length, num_nodes, num_features), jnp.float32)
    edge_seq = jax.random.randint(keys[1], (time_length, 2, num_edges), 0, num_nodes)
    lhat_seq = jnp.stack([build_lhat(edge_seq[t], num_nodes) for t in range(time_length)])

    # Parameters (glorot weights as in _set_parameters / ChebConv.reset_parameters; the module
    # zero-inits biases — small non-zero values are used here to exercise the bias path).
    wpool = glorot(keys[2], (num_features, in_channels))                                  # pool (no bias)
    wx = jnp.stack([glorot(keys[3 + g], (in_channels, in_channels)) for g in range(4)])   # W_i/f/c/o
    theta = jnp.stack([
        jnp.stack([glorot(jax.random.fold_in(keys[7], 100 * g + k), (in_channels, in_channels))
                   for k in range(K)])
        for g in range(4)
    ])                                                                                    # ChebConv lins
    bx = 0.01 * jax.random.normal(keys[8], (4, 1, in_channels), jnp.float32)              # b_i/f/c/o
    bconv = 0.01 * jax.random.normal(keys[9], (4, 1, in_channels), jnp.float32)           # ChebConv biases

    final_emb = gclstm_forward(x_seq, lhat_seq, wpool, wx, bx, theta, bconv)
    jax.block_until_ready(final_emb)

    ref = reference_forward(x_seq, lhat_seq, wpool, wx, bx, theta, bconv)
    assert final_emb.shape == (num_nodes, time_length, in_channels)
    # bf16 MXU operands (f32 accumulation, f32 recurrent state) -> loosened tolerance vs f32 ref.
    err = float(jnp.max(jnp.abs(final_emb - ref)))
    assert err < 3e-2, f"mismatch vs pure-JAX reference (max abs err {err})"

    print("KERNEL_OK")
</pallas_src>

<mosaic_0001>
module attributes {stable_mosaic.version = 11 : i64} {
  func.func @gclstm_kernel(%arg0: i32, %arg1: memref<64x8xbf16, #tpu.memory_space<vmem>>, %arg2: memref<4x16x16xbf16, #tpu.memory_space<vmem>>, %arg3: memref<8x128xbf16, #tpu.memory_space<vmem>>, %arg4: memref<96x128xbf16, #tpu.memory_space<vmem>>, %arg5: memref<1x128xf32, #tpu.memory_space<vmem>>, %arg6: memref<4x16x32xf32, #tpu.memory_space<vmem>>, %arg7: memref<16x32xf32, #tpu.memory_space<vmem>>, %arg8: memref<16x32xf32, #tpu.memory_space<vmem>>, %arg9: memref<64x128xf32, #tpu.memory_space<vmem>>) attributes {dimension_semantics = [#tpu.dimension_semantics<arbitrary>], iteration_bounds = array<i64: 1>, scalar_prefetch = 0 : i64, scratch_operands = 3 : i64, tpu.core_type = #tpu.core_type<tc>, window_params = [{transform_indices = @transform_0, window_bounds = array<i64: 64, 8>}, {transform_indices = @transform_1, window_bounds = array<i64: 4, 16, 16>}, {pipeline_mode = #tpu.pipeline_mode<synchronous>, transform_indices = @transform_2, window_bounds = array<i64: 8, 128>}, {pipeline_mode = #tpu.pipeline_mode<synchronous>, transform_indices = @transform_3, window_bounds = array<i64: 96, 128>}, {pipeline_mode = #tpu.pipeline_mode<synchronous>, transform_indices = @transform_4, window_bounds = array<i64: 1, 128>}, {transform_indices = @transform_5, window_bounds = array<i64: 4, 16, 32>}]} {
    %c0_i32 = arith.constant 0 : i32
    %0 = arith.cmpi eq, %arg0, %c0_i32 : i32
    %1 = arith.extui %0 : i1 to i32
    %c0_i32_0 = arith.constant 0 : i32
    %2 = arith.cmpi ne, %1, %c0_i32_0 : i32
    scf.if %2 {
      %cst_94 = arith.constant 0.000000e+00 : f32
      %219 = vector.broadcast %cst_94 : f32 to vector<16x32xf32>
      %c0_95 = arith.constant 0 : index
      %c0_96 = arith.constant 0 : index
      %220 = vector.load %arg7[%c0_95, %c0_96] : memref<16x32xf32, #tpu.memory_space<vmem>>, vector<16x32xf32>
      tpu.vector_store %arg7[%c0_95, %c0_96], %219 {strides = array<i32>} : memref<16x32xf32, #tpu.memory_space<vmem>>, vector<16x32xf32>,
      %cst_97 = arith.constant 0.000000e+00 : f32
      %221 = vector.broadcast %cst_97 : f32 to vector<16x32xf32>
      %c0_98 = arith.constant 0 : index
      %c0_99 = arith.constant 0 : index
      %222 = vector.load %arg8[%c0_98, %c0_99] : memref<16x32xf32, #tpu.memory_space<vmem>>, vector<16x32xf32>
      tpu.vector_store %arg8[%c0_98, %c0_99], %221 {strides = array<i32>} : memref<16x32xf32, #tpu.memory_space<vmem>>, vector<16x32xf32>,
    } else {
    }
    %c0 = arith.constant 0 : index
    %c0_1 = arith.constant 0 : index
    %3 = vector.load %arg3[%c0, %c0_1] : memref<8x128xbf16, #tpu.memory_space<vmem>>, vector<8x128xbf16>
    %c0_2 = arith.constant 0 : index
    %c0_3 = arith.constant 0 : index
    %4 = vector.load %arg4[%c0_2, %c0_3] : memref<96x128xbf16, #tpu.memory_space<vmem>>, vector<96x128xbf16>
    %c0_4 = arith.constant 0 : index
    %c0_5 = arith.constant 0 : index
    %5 = vector.load %arg5[%c0_4, %c0_5] : memref<1x128xf32, #tpu.memory_space<vmem>>, vector<1x128xf32>
    %6 = vector.shape_cast %5 : vector<1x128xf32> to vector<1x128xf32>
    %7 = vector.broadcast %6 : vector<1x128xf32> to vector<16x128xf32>
    %c0_6 = arith.constant 0 : index
    %c0_7 = arith.constant 0 : index
    %8 = vector.load %arg1[%c0_6, %c0_7] : memref<64x8xbf16, #tpu.memory_space<vmem>>, vector<64x8xbf16>
    %cst = arith.constant dense<0.000000e+00> : vector<64x128xf32>
    %9 = tpu.matmul %8, %3, %cst {dimension_numbers = #tpu.dot_dimension_numbers<[1], [0], [0], [1], [0, 0, 1, 1], [], []>} : vector<64x8xbf16>, vector<8x128xbf16>, vector<64x128xf32> -> vector<64x128xf32>
    %c0_8 = arith.constant 0 : index
    %c0_9 = arith.constant 0 : index
    %10 = vector.load %arg9[%c0_8, %c0_9] : memref<64x128xf32, #tpu.memory_space<vmem>>, vector<64x128xf32>
    tpu.vector_store %arg9[%c0_8, %c0_9], %9 {strides = array<i32>} : memref<64x128xf32, #tpu.memory_space<vmem>>, vector<64x128xf32>,
    %c0_i32_10 = arith.constant 0 : i32
    %11 = arith.index_cast %c0_i32_10 : i32 to index
    %c0_11 = arith.constant 0 : index
    %c0_12 = arith.constant 0 : index
    %12 = vector.load %arg2[%11, %c0_11, %c0_12] : memref<4x16x16xbf16, #tpu.memory_space<vmem>>, vector<1x16x16xbf16>
    %13 = vector.shape_cast %12 : vector<1x16x16xbf16> to vector<16x16xbf16>
    %c0_13 = arith.constant 0 : index
    %c0_14 = arith.constant 0 : index
    %14 = vector.load %arg7[%c0_13, %c0_14] : memref<16x32xf32, #tpu.memory_space<vmem>>, vector<16x32xf32>
    %c0_15 = arith.constant 0 : index
    %c0_16 = arith.constant 0 : index
    %15 = vector.load %arg8[%c0_15, %c0_16] : memref<16x32xf32, #tpu.memory_space<vmem>>, vector<16x32xf32>
    %16 = arith.truncf %14 : vector<16x32xf32> to vector<16x32xbf16>
    %cst_17 = arith.constant dense<0.000000e+00> : vector<16x32xf32>
    %17 = tpu.matmul %13, %16, %cst_17 {dimension_numbers = #tpu.dot_dimension_numbers<[1], [0], [0], [1], [0, 0, 1, 1], [], []>} : vector<16x16xbf16>, vector<16x32xbf16>, vector<16x32xf32> -> vector<16x32xf32>
    %18 = arith.truncf %17 : vector<16x32xf32> to vector<16x32xbf16>
    %cst_18 = arith.constant dense<0.000000e+00> : vector<16x32xf32>
    %19 = tpu.matmul %13, %18, %cst_18 {dimension_numbers = #tpu.dot_dimension_numbers<[1], [0], [0], [1], [0, 0, 1, 1], [], []>} : vector<16x16xbf16>, vector<16x32xbf16>, vector<16x32xf32> -> vector<16x32xf32>
    %cst_19 = arith.constant 2.000000e+00 : f32
    %20 = vector.broadcast %cst_19 : f32 to vector<16x32xf32>
    %21 = arith.mulf %20, %19 : vector<16x32xf32>
    %22 = arith.subf %21, %14 : vector<16x32xf32>
    %23 = tpu.concatenate %14, %17, %22 in 1 : vector<16x32xf32>, vector<16x32xf32>, vector<16x32xf32> -> vector<16x96xf32>
    %24 = arith.truncf %23 : vector<16x96xf32> to vector<16x96xbf16>
    %c16_i32 = arith.constant 16 : i32
    %25 = arith.muli %c0_i32_10, %c16_i32 : i32
    %26 = tpu.assume_multiple %25, 8 : i32
    %27 = arith.index_cast %26 : i32 to index
    %c0_20 = arith.constant 0 : index
    %28 = vector.load %arg9[%27, %c0_20] : memref<64x128xf32, #tpu.memory_space<vmem>>, vector<16x128xf32>
    %cst_21 = arith.constant dense<0.000000e+00> : vector<16x128xf32>
    %29 = tpu.matmul %24, %4, %cst_21 {dimension_numbers = #tpu.dot_dimension_numbers<[1], [0], [0], [1], [0, 0, 1, 1], [], []>} : vector<16x96xbf16>, vector<96x128xbf16>, vector<16x128xf32> -> vector<16x128xf32>
    %30 = arith.addf %28, %29 : vector<16x128xf32>
    %31 = arith.addf %30, %7 : vector<16x128xf32>
    %32 = vector.extract_strided_slice %31 {offsets = [0, 0], sizes = [16, 32], strides = [1, 1]} : vector<16x128xf32> to vector<16x32xf32>
    %33 = arith.negf %32 : vector<16x32xf32>
    %34 = math.exp %33 : vector<16x32xf32>
    %cst_22 = arith.constant 1.000000e+00 : f32
    %35 = vector.broadcast %cst_22 : f32 to vector<16x32xf32>
    %36 = arith.addf %35, %34 : vector<16x32xf32>
    %37 = arith.divf %35, %36 : vector<16x32xf32>
    %38 = vector.extract_strided_slice %31 {offsets = [0, 32], sizes = [16, 32], strides = [1, 1]} : vector<16x128xf32> to vector<16x32xf32>
    %39 = arith.negf %38 : vector<16x32xf32>
    %40 = math.exp %39 : vector<16x32xf32>
    %cst_23 = arith.constant 1.000000e+00 : f32
    %41 = vector.broadcast %cst_23 : f32 to vector<16x32xf32>
    %42 = arith.addf %41, %40 : vector<16x32xf32>
    %43 = arith.divf %41, %42 : vector<16x32xf32>
    %44 = vector.extract_strided_slice %31 {offsets = [0, 64], sizes = [16, 32], strides = [1, 1]} : vector<16x128xf32> to vector<16x32xf32>
    %45 = math.tanh %44 : vector<16x32xf32>
    %46 = vector.extract_strided_slice %31 {offsets = [0, 96], sizes = [16, 32], strides = [1, 1]} : vector<16x128xf32> to vector<16x32xf32>
    %47 = arith.negf %46 : vector<16x32xf32>
    %48 = math.exp %47 : vector<16x32xf32>
    %cst_24 = arith.constant 1.000000e+00 : f32
    %49 = vector.broadcast %cst_24 : f32 to vector<16x32xf32>
    %50 = arith.addf %49, %48 : vector<16x32xf32>
    %51 = arith.divf %49, %50 : vector<16x32xf32>
    %52 = arith.mulf %43, %15 : vector<16x32xf32>
    %53 = arith.mulf %37, %45 : vector<16x32xf32>
    %54 = arith.addf %52, %53 : vector<16x32xf32>
    %55 = math.tanh %54 : vector<16x32xf32>
    %56 = arith.mulf %51, %55 : vector<16x32xf32>
    %c0_25 = arith.constant 0 : index
    %c0_26 = arith.constant 0 : index
    %57 = vector.load %arg7[%c0_25, %c0_26] : memref<16x32xf32, #tpu.memory_space<vmem>>, vector<16x32xf32>
    tpu.vector_store %arg7[%c0_25, %c0_26], %56 {strides = array<i32>} : memref<16x32xf32, #tpu.memory_space<vmem>>, vector<16x32xf32>,
    %c0_27 = arith.constant 0 : index
    %c0_28 = arith.constant 0 : index
    %58 = vector.load %arg8[%c0_27, %c0_28] : memref<16x32xf32, #tpu.memory_space<vmem>>, vector<16x32xf32>
    tpu.vector_store %arg8[%c0_27, %c0_28], %54 {strides = array<i32>} : memref<16x32xf32, #tpu.memory_space<vmem>>, vector<16x32xf32>,
    %59 = arith.index_cast %c0_i32_10 : i32 to index
    %c0_29 = arith.constant 0 : index
    %c0_30 = arith.constant 0 : index
    %60 = vector.load %arg6[%59, %c0_29, %c0_30] : memref<4x16x32xf32, #tpu.memory_space<vmem>>, vector<1x16x32xf32>
    %61 = vector.shape_cast %60 : vector<1x16x32xf32> to vector<16x32xf32>
    %62 = vector.shape_cast %56 : vector<16x32xf32> to vector<1x16x32xf32>
    tpu.vector_store %arg6[%59, %c0_29, %c0_30], %62 {strides = array<i32>} : memref<4x16x32xf32, #tpu.memory_space<vmem>>, vector<1x16x32xf32>,
    %c1_i32 = arith.constant 1 : i32
    %63 = arith.index_cast %c1_i32 : i32 to index
    %c0_31 = arith.constant 0 : index
    %c0_32 = arith.constant 0 : index
    %64 = vector.load %arg2[%63, %c0_31, %c0_32] : memref<4x16x16xbf16, #tpu.memory_space<vmem>>, vector<1x16x16xbf16>
    %65 = vector.shape_cast %64 : vector<1x16x16xbf16> to vector<16x16xbf16>
    %c0_33 = arith.constant 0 : index
    %c0_34 = arith.constant 0 : index
    %66 = vector.load %arg7[%c0_33, %c0_34] : memref<16x32xf32, #tpu.memory_space<vmem>>, vector<16x32xf32>
    %c0_35 = arith.constant 0 : index
    %c0_36 = arith.constant 0 : index
    %67 = vector.load %arg8[%c0_35, %c0_36] : memref<16x32xf32, #tpu.memory_space<vmem>>, vector<16x32xf32>
    %68 = arith.truncf %66 : vector<16x32xf32> to vector<16x32xbf16>
    %cst_37 = arith.constant dense<0.000000e+00> : vector<16x32xf32>
    %69 = tpu.matmul %65, %68, %cst_37 {dimension_numbers = #tpu.dot_dimension_numbers<[1], [0], [0], [1], [0, 0, 1, 1], [], []>} : vector<16x16xbf16>, vector<16x32xbf16>, vector<16x32xf32> -> vector<16x32xf32>
    %70 = arith.truncf %69 : vector<16x32xf32> to vector<16x32xbf16>
    %cst_38 = arith.constant dense<0.000000e+00> : vector<16x32xf32>
    %71 = tpu.matmul %65, %70, %cst_38 {dimension_numbers = #tpu.dot_dimension_numbers<[1], [0], [0], [1], [0, 0, 1, 1], [], []>} : vector<16x16xbf16>, vector<16x32xbf16>, vector<16x32xf32> -> vector<16x32xf32>
    %cst_39 = arith.constant 2.000000e+00 : f32
    %72 = vector.broadcast %cst_39 : f32 to vector<16x32xf32>
    %73 = arith.mulf %72, %71 : vector<16x32xf32>
    %74 = arith.subf %73, %66 : vector<16x32xf32>
    %75 = tpu.concatenate %66, %69, %74 in 1 : vector<16x32xf32>, vector<16x32xf32>, vector<16x32xf32> -> vector<16x96xf32>
    %76 = arith.truncf %75 : vector<16x96xf32> to vector<16x96xbf16>
    %c16_i32_40 = arith.constant 16 : i32
    %77 = arith.muli %c1_i32, %c16_i32_40 : i32
    %78 = tpu.assume_multiple %77, 8 : i32
    %79 = arith.index_cast %78 : i32 to index
    %c0_41 = arith.constant 0 : index
    %80 = vector.load %arg9[%79, %c0_41] : memref<64x128xf32, #tpu.memory_space<vmem>>, vector<16x128xf32>
    %cst_42 = arith.constant dense<0.000000e+00> : vector<16x128xf32>
    %81 = tpu.matmul %76, %4, %cst_42 {dimension_numbers = #tpu.dot_dimension_numbers<[1], [0], [0], [1], [0, 0, 1, 1], [], []>} : vector<16x96xbf16>, vector<96x128xbf16>, vector<16x128xf32> -> vector<16x128xf32>
    %82 = arith.addf %80, %81 : vector<16x128xf32>
    %83 = arith.addf %82, %7 : vector<16x128xf32>
    %84 = vector.extract_strided_slice %83 {offsets = [0, 0], sizes = [16, 32], strides = [1, 1]} : vector<16x128xf32> to vector<16x32xf32>
    %85 = arith.negf %84 : vector<16x32xf32>
    %86 = math.exp %85 : vector<16x32xf32>
    %cst_43 = arith.constant 1.000000e+00 : f32
    %87 = vector.broadcast %cst_43 : f32 to vector<16x32xf32>
    %88 = arith.addf %87, %86 : vector<16x32xf32>
    %89 = arith.divf %87, %88 : vector<16x32xf32>
    %90 = vector.extract_strided_slice %83 {offsets = [0, 32], sizes = [16, 32], strides = [1, 1]} : vector<16x128xf32> to vector<16x32xf32>
    %91 = arith.negf %90 : vector<16x32xf32>
    %92 = math.exp %91 : vector<16x32xf32>
    %cst_44 = arith.constant 1.000000e+00 : f32
    %93 = vector.broadcast %cst_44 : f32 to vector<16x32xf32>
    %94 = arith.addf %93, %92 : vector<16x32xf32>
    %95 = arith.divf %93, %94 : vector<16x32xf32>
    %96 = vector.extract_strided_slice %83 {offsets = [0, 64], sizes = [16, 32], strides = [1, 1]} : vector<16x128xf32> to vector<16x32xf32>
    %97 = math.tanh %96 : vector<16x32xf32>
    %98 = vector.extract_strided_slice %83 {offsets = [0, 96], sizes = [16, 32], strides = [1, 1]} : vector<16x128xf32> to vector<16x32xf32>
    %99 = arith.negf %98 : vector<16x32xf32>
    %100 = math.exp %99 : vector<16x32xf32>
    %cst_45 = arith.constant 1.000000e+00 : f32
    %101 = vector.broadcast %cst_45 : f32 to vector<16x32xf32>
    %102 = arith.addf %101, %100 : vector<16x32xf32>
    %103 = arith.divf %101, %102 : vector<16x32xf32>
    %104 = arith.mulf %95, %67 : vector<16x32xf32>
    %105 = arith.mulf %89, %97 : vector<16x32xf32>
    %106 = arith.addf %104, %105 : vector<16x32xf32>
    %107 = math.tanh %106 : vector<16x32xf32>
    %108 = arith.mulf %103, %107 : vector<16x32xf32>
    %c0_46 = arith.constant 0 : index
    %c0_47 = arith.constant 0 : index
    %109 = vector.load %arg7[%c0_46, %c0_47] : memref<16x32xf32, #tpu.memory_space<vmem>>, vector<16x32xf32>
    tpu.vector_store %arg7[%c0_46, %c0_47], %108 {strides = array<i32>} : memref<16x32xf32, #tpu.memory_space<vmem>>, vector<16x32xf32>,
    %c0_48 = arith.constant 0 : index
    %c0_49 = arith.constant 0 : index
    %110 = vector.load %arg8[%c0_48, %c0_49] : memref<16x32xf32, #tpu.memory_space<vmem>>, vector<16x32xf32>
    tpu.vector_store %arg8[%c0_48, %c0_49], %106 {strides = array<i32>} : memref<16x32xf32, #tpu.memory_space<vmem>>, vector<16x32xf32>,
    %111 = arith.index_cast %c1_i32 : i32 to index
    %c0_50 = arith.constant 0 : index
    %c0_51 = arith.constant 0 : index
    %112 = vector.load %arg6[%111, %c0_50, %c0_51] : memref<4x16x32xf32, #tpu.memory_space<vmem>>, vector<1x16x32xf32>
    %113 = vector.shape_cast %112 : vector<1x16x32xf32> to vector<16x32xf32>
    %114 = vector.shape_cast %108 : vector<16x32xf32> to vector<1x16x32xf32>
    tpu.vector_store %arg6[%111, %c0_50, %c0_51], %114 {strides = array<i32>} : memref<4x16x32xf32, #tpu.memory_space<vmem>>, vector<1x16x32xf32>,
    %c2_i32 = arith.constant 2 : i32
    %115 = arith.index_cast %c2_i32 : i32 to index
    %c0_52 = arith.constant 0 : index
    %c0_53 = arith.constant 0 : index
    %116 = vector.load %arg2[%115, %c0_52, %c0_53] : memref<4x16x16xbf16, #tpu.memory_space<vmem>>, vector<1x16x16xbf16>
    %117 = vector.shape_cast %116 : vector<1x16x16xbf16> to vector<16x16xbf16>
    %c0_54 = arith.constant 0 : index
    %c0_55 = arith.constant 0 : index
    %118 = vector.load %arg7[%c0_54, %c0_55] : memref<16x32xf32, #tpu.memory_space<vmem>>, vector<16x32xf32>
    %c0_56 = arith.constant 0 : index
    %c0_57 = arith.constant 0 : index
    %119 = vector.load %arg8[%c0_56, %c0_57] : memref<16x32xf32, #tpu.memory_space<vmem>>, vector<16x32xf32>
    %120 = arith.truncf %118 : vector<16x32xf32> to vector<16x32xbf16>
    %cst_58 = arith.constant dense<0.000000e+00> : vector<16x32xf32>
    %121 = tpu.matmul %117, %120, %cst_58 {dimension_numbers = #tpu.dot_dimension_numbers<[1], [0], [0], [1], [0, 0, 1, 1], [], []>} : vector<16x16xbf16>, vector<16x32xbf16>, vector<16x32xf32> -> vector<16x32xf32>
    %122 = arith.truncf %121 : vector<16x32xf32> to vector<16x32xbf16>
    %cst_59 = arith.constant dense<0.000000e+00> : vector<16x32xf32>
    %123 = tpu.matmul %117, %122, %cst_59 {dimension_numbers = #tpu.dot_dimension_numbers<[1], [0], [0], [1], [0, 0, 1, 1], [], []>} : vector<16x16xbf16>, vector<16x32xbf16>, vector<16x32xf32> -> vector<16x32xf32>
    %cst_60 = arith.constant 2.000000e+00 : f32
    %124 = vector.broadcast %cst_60 : f32 to vector<16x32xf32>
    %125 = arith.mulf %124, %123 : vector<16x32xf32>
    %126 = arith.subf %125, %118 : vector<16x32xf32>
    %127 = tpu.concatenate %118, %121, %126 in 1 : vector<16x32xf32>, vector<16x32xf32>, vector<16x32xf32> -> vector<16x96xf32>
    %128 = arith.truncf %127 : vector<16x96xf32> to vector<16x96xbf16>
    %c16_i32_61 = arith.constant 16 : i32
    %129 = arith.muli %c2_i32, %c16_i32_61 : i32
    %130 = tpu.assume_multiple %129, 8 : i32
    %131 = arith.index_cast %130 : i32 to index
    %c0_62 = arith.constant 0 : index
    %132 = vector.load %arg9[%131, %c0_62] : memref<64x128xf32, #tpu.memory_space<vmem>>, vector<16x128xf32>
    %cst_63 = arith.constant dense<0.000000e+00> : vector<16x128xf32>
    %133 = tpu.matmul %128, %4, %cst_63 {dimension_numbers = #tpu.dot_dimension_numbers<[1], [0], [0], [1], [0, 0, 1, 1], [], []>} : vector<16x96xbf16>, vector<96x128xbf16>, vector<16x128xf32> -> vector<16x128xf32>
    %134 = arith.addf %132, %133 : vector<16x128xf32>
    %135 = arith.addf %134, %7 : vector<16x128xf32>
    %136 = vector.extract_strided_slice %135 {offsets = [0, 0], sizes = [16, 32], strides = [1, 1]} : vector<16x128xf32> to vector<16x32xf32>
    %137 = arith.negf %136 : vector<16x32xf32>
    %138 = math.exp %137 : vector<16x32xf32>
    %cst_64 = arith.constant 1.000000e+00 : f32
    %139 = vector.broadcast %cst_64 : f32 to vector<16x32xf32>
    %140 = arith.addf %139, %138 : vector<16x32xf32>
    %141 = arith.divf %139, %140 : vector<16x32xf32>
    %142 = vector.extract_strided_slice %135 {offsets = [0, 32], sizes = [16, 32], strides = [1, 1]} : vector<16x128xf32> to vector<16x32xf32>
    %143 = arith.negf %142 : vector<16x32xf32>
    %144 = math.exp %143 : vector<16x32xf32>
    %cst_65 = arith.constant 1.000000e+00 : f32
    %145 = vector.broadcast %cst_65 : f32 to vector<16x32xf32>
    %146 = arith.addf %145, %144 : vector<16x32xf32>
    %147 = arith.divf %145, %146 : vector<16x32xf32>
    %148 = vector.extract_strided_slice %135 {offsets = [0, 64], sizes = [16, 32], strides = [1, 1]} : vector<16x128xf32> to vector<16x32xf32>
    %149 = math.tanh %148 : vector<16x32xf32>
    %150 = vector.extract_strided_slice %135 {offsets = [0, 96], sizes = [16, 32], strides = [1, 1]} : vector<16x128xf32> to vector<16x32xf32>
    %151 = arith.negf %150 : vector<16x32xf32>
    %152 = math.exp %151 : vector<16x32xf32>
    %cst_66 = arith.constant 1.000000e+00 : f32
    %153 = vector.broadcast %cst_66 : f32 to vector<16x32xf32>
    %154 = arith.addf %153, %152 : vector<16x32xf32>
    %155 = arith.divf %153, %154 : vector<16x32xf32>
    %156 = arith.mulf %147, %119 : vector<16x32xf32>
    %157 = arith.mulf %141, %149 : vector<16x32xf32>
    %158 = arith.addf %156, %157 : vector<16x32xf32>
    %159 = math.tanh %158 : vector<16x32xf32>
    %160 = arith.mulf %155, %159 : vector<16x32xf32>
    %c0_67 = arith.constant 0 : index
    %c0_68 = arith.constant 0 : index
    %161 = vector.load %arg7[%c0_67, %c0_68] : memref<16x32xf32, #tpu.memory_space<vmem>>, vector<16x32xf32>
    tpu.vector_store %arg7[%c0_67, %c0_68], %160 {strides = array<i32>} : memref<16x32xf32, #tpu.memory_space<vmem>>, vector<16x32xf32>,
    %c0_69 = arith.constant 0 : index
    %c0_70 = arith.constant 0 : index
    %162 = vector.load %arg8[%c0_69, %c0_70] : memref<16x32xf32, #tpu.memory_space<vmem>>, vector<16x32xf32>
    tpu.vector_store %arg8[%c0_69, %c0_70], %158 {strides = array<i32>} : memref<16x32xf32, #tpu.memory_space<vmem>>, vector<16x32xf32>,
    %163 = arith.index_cast %c2_i32 : i32 to index
    %c0_71 = arith.constant 0 : index
    %c0_72 = arith.constant 0 : index
    %164 = vector.load %arg6[%163, %c0_71, %c0_72] : memref<4x16x32xf32, #tpu.memory_space<vmem>>, vector<1x16x32xf32>
    %165 = vector.shape_cast %164 : vector<1x16x32xf32> to vector<16x32xf32>
    %166 = vector.shape_cast %160 : vector<16x32xf32> to vector<1x16x32xf32>
    tpu.vector_store %arg6[%163, %c0_71, %c0_72], %166 {strides = array<i32>} : memref<4x16x32xf32, #tpu.memory_space<vmem>>, vector<1x16x32xf32>,
    %c3_i32 = arith.constant 3 : i32
    %167 = arith.index_cast %c3_i32 : i32 to index
    %c0_73 = arith.constant 0 : index
    %c0_74 = arith.constant 0 : index
    %168 = vector.load %arg2[%167, %c0_73, %c0_74] : memref<4x16x16xbf16, #tpu.memory_space<vmem>>, vector<1x16x16xbf16>
    %169 = vector.shape_cast %168 : vector<1x16x16xbf16> to vector<16x16xbf16>
    %c0_75 = arith.constant 0 : index
    %c0_76 = arith.constant 0 : index
    %170 = vector.load %arg7[%c0_75, %c0_76] : memref<16x32xf32, #tpu.memory_space<vmem>>, vector<16x32xf32>
    %c0_77 = arith.constant 0 : index
    %c0_78 = arith.constant 0 : index
    %171 = vector.load %arg8[%c0_77, %c0_78] : memref<16x32xf32, #tpu.memory_space<vmem>>, vector<16x32xf32>
    %172 = arith.truncf %170 : vector<16x32xf32> to vector<16x32xbf16>
    %cst_79 = arith.constant dense<0.000000e+00> : vector<16x32xf32>
    %173 = tpu.matmul %169, %172, %cst_79 {dimension_numbers = #tpu.dot_dimension_numbers<[1], [0], [0], [1], [0, 0, 1, 1], [], []>} : vector<16x16xbf16>, vector<16x32xbf16>, vector<16x32xf32> -> vector<16x32xf32>
    %174 = arith.truncf %173 : vector<16x32xf32> to vector<16x32xbf16>
    %cst_80 = arith.constant dense<0.000000e+00> : vector<16x32xf32>
    %175 = tpu.matmul %169, %174, %cst_80 {dimension_numbers = #tpu.dot_dimension_numbers<[1], [0], [0], [1], [0, 0, 1, 1], [], []>} : vector<16x16xbf16>, vector<16x32xbf16>, vector<16x32xf32> -> vector<16x32xf32>
    %cst_81 = arith.constant 2.000000e+00 : f32
    %176 = vector.broadcast %cst_81 : f32 to vector<16x32xf32>
    %177 = arith.mulf %176, %175 : vector<16x32xf32>
    %178 = arith.subf %177, %170 : vector<16x32xf32>
    %179 = tpu.concatenate %170, %173, %178 in 1 : vector<16x32xf32>, vector<16x32xf32>, vector<16x32xf32> -> vector<16x96xf32>
    %180 = arith.truncf %179 : vector<16x96xf32> to vector<16x96xbf16>
    %c16_i32_82 = arith.constant 16 : i32
    %181 = arith.muli %c3_i32, %c16_i32_82 : i32
    %182 = tpu.assume_multiple %181, 8 : i32
    %183 = arith.index_cast %182 : i32 to index
    %c0_83 = arith.constant 0 : index
    %184 = vector.load %arg9[%183, %c0_83] : memref<64x128xf32, #tpu.memory_space<vmem>>, vector<16x128xf32>
    %cst_84 = arith.constant dense<0.000000e+00> : vector<16x128xf32>
    %185 = tpu.matmul %180, %4, %cst_84 {dimension_numbers = #tpu.dot_dimension_numbers<[1], [0], [0], [1], [0, 0, 1, 1], [], []>} : vector<16x96xbf16>, vector<96x128xbf16>, vector<16x128xf32> -> vector<16x128xf32>
    %186 = arith.addf %184, %185 : vector<16x128xf32>
    %187 = arith.addf %186, %7 : vector<16x128xf32>
    %188 = vector.extract_strided_slice %187 {offsets = [0, 0], sizes = [16, 32], strides = [1, 1]} : vector<16x128xf32> to vector<16x32xf32>
    %189 = arith.negf %188 : vector<16x32xf32>
    %190 = math.exp %189 : vector<16x32xf32>
    %cst_85 = arith.constant 1.000000e+00 : f32
    %191 = vector.broadcast %cst_85 : f32 to vector<16x32xf32>
    %192 = arith.addf %191, %190 : vector<16x32xf32>
    %193 = arith.divf %191, %192 : vector<16x32xf32>
    %194 = vector.extract_strided_slice %187 {offsets = [0, 32], sizes = [16, 32], strides = [1, 1]} : vector<16x128xf32> to vector<16x32xf32>
    %195 = arith.negf %194 : vector<16x32xf32>
    %196 = math.exp %195 : vector<16x32xf32>
    %cst_86 = arith.constant 1.000000e+00 : f32
    %197 = vector.broadcast %cst_86 : f32 to vector<16x32xf32>
    %198 = arith.addf %197, %196 : vector<16x32xf32>
    %199 = arith.divf %197, %198 : vector<16x32xf32>
    %200 = vector.extract_strided_slice %187 {offsets = [0, 64], sizes = [16, 32], strides = [1, 1]} : vector<16x128xf32> to vector<16x32xf32>
    %201 = math.tanh %200 : vector<16x32xf32>
    %202 = vector.extract_strided_slice %187 {offsets = [0, 96], sizes = [16, 32], strides = [1, 1]} : vector<16x128xf32> to vector<16x32xf32>
    %203 = arith.negf %202 : vector<16x32xf32>
    %204 = math.exp %203 : vector<16x32xf32>
    %cst_87 = arith.constant 1.000000e+00 : f32
    %205 = vector.broadcast %cst_87 : f32 to vector<16x32xf32>
    %206 = arith.addf %205, %204 : vector<16x32xf32>
    %207 = arith.divf %205, %206 : vector<16x32xf32>
    %208 = arith.mulf %199, %171 : vector<16x32xf32>
    %209 = arith.mulf %193, %201 : vector<16x32xf32>
    %210 = arith.addf %208, %209 : vector<16x32xf32>
    %211 = math.tanh %210 : vector<16x32xf32>
    %212 = arith.mulf %207, %211 : vector<16x32xf32>
    %c0_88 = arith.constant 0 : index
    %c0_89 = arith.constant 0 : index
    %213 = vector.load %arg7[%c0_88, %c0_89] : memref<16x32xf32, #tpu.memory_space<vmem>>, vector<16x32xf32>
    tpu.vector_store %arg7[%c0_88, %c0_89], %212 {strides = array<i32>} : memref<16x32xf32, #tpu.memory_space<vmem>>, vector<16x32xf32>,
    %c0_90 = arith.constant 0 : index
    %c0_91 = arith.constant 0 : index
    %214 = vector.load %arg8[%c0_90, %c0_91] : memref<16x32xf32, #tpu.memory_space<vmem>>, vector<16x32xf32>
    tpu.vector_store %arg8[%c0_90, %c0_91], %210 {strides = array<i32>} : memref<16x32xf32, #tpu.memory_space<vmem>>, vector<16x32xf32>,
    %215 = arith.index_cast %c3_i32 : i32 to index
    %c0_92 = arith.constant 0 : index
    %c0_93 = arith.constant 0 : index
    %216 = vector.load %arg6[%215, %c0_92, %c0_93] : memref<4x16x32xf32, #tpu.memory_space<vmem>>, vector<1x16x32xf32>
    %217 = vector.shape_cast %216 : vector<1x16x32xf32> to vector<16x32xf32>
    %218 = vector.shape_cast %212 : vector<16x32xf32> to vector<1x16x32xf32>
    tpu.vector_store %arg6[%215, %c0_92, %c0_93], %218 {strides = array<i32>} : memref<4x16x32xf32, #tpu.memory_space<vmem>>, vector<1x16x32xf32>,
    %c4_i32 = arith.constant 4 : i32
    return
  }
  func.func @transform_0(%arg0: i32) -> (i32, i32) {
    %c0_i32 = arith.constant 0 : i32
    %c0_i32_0 = arith.constant 0 : i32
    return %arg0, %c0_i32 : i32, i32
  }
  func.func @transform_1(%arg0: i32) -> (i32, i32, i32) {
    %c0_i32 = arith.constant 0 : i32
    %c0_i32_0 = arith.constant 0 : i32
    %c0_i32_1 = arith.constant 0 : i32
    return %arg0, %c0_i32, %c0_i32_0 : i32, i32, i32
  }
  func.func @transform_2(%arg0: i32) -> (i32, i32) {
    %c0_i32 = arith.constant 0 : i32
    %c0_i32_0 = arith.constant 0 : i32
    %c0_i32_1 = arith.constant 0 : i32
    return %c0_i32, %c0_i32_0 : i32, i32
  }
  func.func @transform_3(%arg0: i32) -> (i32, i32) {
    %c0_i32 = arith.constant 0 : i32
    %c0_i32_0 = arith.constant 0 : i32
    %c0_i32_1 = arith.constant 0 : i32
    return %c0_i32, %c0_i32_0 : i32, i32
  }
  func.func @transform_4(%arg0: i32) -> (i32, i32) {
    %c0_i32 = arith.constant 0 : i32
    %c0_i32_0 = arith.constant 0 : i32
    %c0_i32_1 = arith.constant 0 : i32
    return %c0_i32, %c0_i32_0 : i32, i32
  }
  func.func @transform_5(%arg0: i32) -> (i32, i32, i32) {
    %c0_i32 = arith.constant 0 : i32
    %c0_i32_0 = arith.constant 0 : i32
    %c0_i32_1 = arith.constant 0 : i32
    return %arg0, %c0_i32, %c0_i32_0 : i32, i32, i32
  }
}

</mosaic_0001>

<llo_original>
// kernel: tpu_custom_call.1
$region0: #{tpu_custom_call.1}
  #allocation0 [shape = 'u32[]', space=smem, size = 0x4, offset = 0x4, fixed_abs, tag = 'smem constant byte address 0x4 - core index']
  #allocation1 [shape = 'u32[144,128]{1,0:T(1,128)}', space=vmem, size = 0x12000, scoped, tag = 'internal scratch']
  #allocation2 [shape = 'f32[16,32]{1,0:T(8,128)}', space=vmem, size = 0x2000, scoped, tag = 'scratch operand']
  #allocation3 [shape = 'f32[16,32]{1,0:T(8,128)}', space=vmem, size = 0x2000, scoped, tag = 'scratch operand']
  #allocation4 [shape = 'f32[64,128]{1,0:T(8,128)}', space=vmem, size = 0x8000, scoped, tag = 'scratch operand']
  %s0 = inlined_call_operand.vmem [shape: bf16[64,8], index: 0, kind: input, shape index: {}]
  %s1 = inlined_call_operand.vmem [shape: bf16[4,16,16], index: 1, kind: input, shape index: {}]
  %s2 = inlined_call_operand.vmem [shape: bf16[8,128], index: 2, kind: input, shape index: {}]
  %s3 = inlined_call_operand.hbm [shape: bf16[96,128], index: 3, kind: input, shape index: {}]
  %s4 = inlined_call_operand.vmem [shape: f32[1,128], index: 4, kind: input, shape index: {}]
  %s5 = inlined_call_operand.hbm [shape: f32[4,16,32], index: 5, kind: output, shape index: {}]
  %s6 = sld [smem:[#allocation0]]
  $region38: #{tpu_custom_call.1} parent=0
    _
  %s8 = ssub.s32 1, %s6
  %s9 = scalar_select 0, %s8, %s6
  $region1: #{tpu_custom_call.1} parent=0
    #allocation5 [shape = 'u8[24576]{0}', space=vmem, size = 0x6000, scoped, tag = 'input window, operand 3, single buffered']
    #allocation6 [shape = 's32[1]{0}', space=sflag, size = 0x4, scoped, tag = 'scoped memory for tpu_custom_call.1']
    #allocation7 [shape = 's32[1]{0}', space=sflag, size = 0x4, scoped, tag = 'scoped memory for tpu_custom_call.1']
    #allocation8 [shape = 'u8[32768]{0}', space=vmem, size = 0x8000, scoped, tag = 'output window, operand 0, single buffered']
    %10 = vsyncpa [#allocation6], 0
    %11 = vsyncpa [#allocation7], 0
    // Predicated region
    $region2: #{tpu_custom_call.1} parent=1 // pred_check
      _
    $region3: #{tpu_custom_call.1} parent=1 // pred_check_branch
      %13 = sbr.rel (0) target = $region5
    $region4: #{tpu_custom_call.1} parent=1 // pred_region
      _
    $region5: #{tpu_custom_call.1} parent=1 // pred_fallthru
      _
    // Predicated region
    $region6: #{tpu_custom_call.1} parent=1 // pred_check
      _
    $region7: #{tpu_custom_call.1} parent=1 // pred_check_branch
      %15 = sbr.rel (0) target = $region9
    $region8: #{tpu_custom_call.1} parent=1 // pred_region
      _
    $region9: #{tpu_custom_call.1} parent=1 // pred_fallthru
      _
    // Predicated region
    $region10: #{tpu_custom_call.1} parent=1 // pred_check
      _
    $region11: #{tpu_custom_call.1} parent=1 // pred_check_branch
      %17 = sbr.rel (0) target = $region13
    $region12: #{tpu_custom_call.1} parent=1 // pred_region
      _
    $region13: #{tpu_custom_call.1} parent=1 // pred_fallthru
      _
    // Predicated region
    $region14: #{tpu_custom_call.1} parent=1 // pred_check
      _
    $region15: #{tpu_custom_call.1} parent=1 // pred_check_branch
      %19 = sbr.rel (0) target = $region17
    $region16: #{tpu_custom_call.1} parent=1 // pred_region
      %s21 = ssub.s32 768, 768
      %22 = vsyncadd [#allocation6], %s21
      %s23 = sshll.u32 [#allocation5], 4
      %s24 = int_to_ptr.vmem [resolvable:$true] %s23
      %29 = dma.hbm_to_vmem [thread:$0]  %s3, 768, %s24, [#allocation6], 64, 64, 4
    $region17: #{tpu_custom_call.1} parent=1 // pred_fallthru
      _
    // Predicated region
    $region18: #{tpu_custom_call.1} parent=1 // pred_check
      _
    $region19: #{tpu_custom_call.1} parent=1 // pred_check_branch
      %31 = sbr.rel (0) target = $region21
    $region20: #{tpu_custom_call.1} parent=1 // pred_region
      _
    $region21: #{tpu_custom_call.1} parent=1 // pred_fallthru
      _
    // Predicated region
    $region22: #{tpu_custom_call.1} parent=1 // pred_check
      _
    $region23: #{tpu_custom_call.1} parent=1 // pred_check_branch
      %33 = sbr.rel (0) target = $region25
    $region24: #{tpu_custom_call.1} parent=1 // pred_region
      %34 = dma.done [#allocation6], 768
    $region25: #{tpu_custom_call.1} parent=1 // pred_fallthru
      _
    %p36 = scmp.eq.s32.totalorder 0, 0
    // Predicated region
    $region26: #{tpu_custom_call.1} parent=1 // pred_check
      %p37 = pneg %p36
    $region27: #{tpu_custom_call.1} parent=1 // pred_check_branch
      %39 = sbr.rel (%p37) target = $region29
    $region28: #{tpu_custom_call.1} parent=1 // pred_region
      %vm40 = vcmask 261120
      %41 = vst.msk [vmem:[#allocation2] sm:$0xff] %vm40, 0.0
      %42 = vst.msk [vmem:[#allocation2 + $0x8] sm:$0xff] %vm40, 0.0
      %43 = vst.msk [vmem:[#allocation3] sm:$0xff] %vm40, 0.0
      %44 = vst.msk [vmem:[#allocation3 + $0x8] sm:$0xff] %vm40, 0.0
    $region29: #{tpu_custom_call.1} parent=1 // pred_fallthru
      _
    %v45 = vld [vmem:[%s2] sm:$0xf]
    %v46 = vld [vmem:[#allocation5] sm:$0xf]
    %v47 = vld [vmem:[#allocation5 + $0x4] sm:$0xf]
    %v48 = vld [vmem:[#allocation5 + $0x8] sm:$0xf]
    %v49 = vld [vmem:[#allocation5 + $0xc] sm:$0xf]
    %v50 = vld [vmem:[#allocation5 + $0x10] sm:$0xf]
    %v51 = vld [vmem:[#allocation5 + $0x14] sm:$0xf]
    %v52 = vld [vmem:[#allocation5 + $0x18] sm:$0xf]
    %v53 = vld [vmem:[#allocation5 + $0x1c] sm:$0xf]
    %v54 = vld [vmem:[#allocation5 + $0x20] sm:$0xf]
    %v55 = vld [vmem:[#allocation5 + $0x24] sm:$0xf]
    %v56 = vld [vmem:[#allocation5 + $0x28] sm:$0xf]
    %v57 = vld [vmem:[#allocation5 + $0x2c] sm:$0xf]
    %v58 = vld [vmem:[%s4] sm:$0x1]
    %v60 = vlaneseq
    %v61 = vshrl.u32 %v60, 7
    %v62 = vsub.s32 0, %v61
    %v63 = vrot.slane %v58, %v62
    %v65 = vld [vmem:[%s0] sm:$0xf]
    %v66 = vld [vmem:[%s0 + $0x4] sm:$0xf]
    %v67 = vld [vmem:[%s0 + $0x8] sm:$0xf]
    %v68 = vld [vmem:[%s0 + $0xc] sm:$0xf]
    %v69 = vld [vmem:[%s0 + $0x10] sm:$0xf]
    %v70 = vld [vmem:[%s0 + $0x14] sm:$0xf]
    %v71 = vld [vmem:[%s0 + $0x18] sm:$0xf]
    %v72 = vld [vmem:[%s0 + $0x1c] sm:$0xf]
    %v81 = vunpack.c.l.b16 %v65
    %v82 = vunpack.c.l.b16 %v66
    %v83 = vunpack.c.l.b16 %v67
    %v84 = vunpack.c.l.b16 %v68
    %v85 = vunpack.c.l.b16 %v69
    %v86 = vunpack.c.l.b16 %v70
    %v87 = vunpack.c.l.b16 %v71
    %v88 = vunpack.c.l.b16 %v72
    %v89 = vpack.c.b16 %v82, %v81
    %v90 = vpack.c.b16 %v84, %v83
    %v91 = vpack.c.b16 %v86, %v85
    %v92 = vpack.c.b16 %v88, %v87
    %vm93 = vcmask 64512
    %v95 = vsel %vm93, %v89, 0
    %v98 = vsel %vm93, %v90, 0
    %v101 = vsel %vm93, %v91, 0
    %v104 = vsel %vm93, %v92, 0
    %vm106 = vcmask 1043456
    %v108 = vsel %vm106, %v45, 0
    %110 = vmatprep.subr.bf16.mxu0 0
    %111 = vmatpush1.bf16.msra.mxu0 0
    %112 = vmatprep.subr.bf16.mxu0 0
    %113 = vmatpush1.bf16.msra.mxu0 0
    %114 = vmatprep.subr.bf16.mxu0 0
    %115 = vmatpush1.bf16.msra.mxu0 0
    %116 = vmatprep.subr.bf16.mxu0 0
    %117 = vmatpush1.bf16.msra.mxu0 0
    %118 = vmatprep.subr.bf16.mxu0 0
    %119 = vmatpush1.bf16.msra.mxu0 0
    %120 = vmatprep.subr.bf16.mxu0 0
    %121 = vmatpush1.bf16.msra.mxu0 0
    %122 = vmatprep.subr.bf16.mxu0 0
    %123 = vmatpush1.bf16.msra.mxu0 0
    %124 = vmatprep.subr.bf16.mxu0 0
    %125 = vmatpush1.bf16.msra.mxu0 %v108
    %126 = vmatprep.subr.bf16.mxu0 0
    %127 = vmatpush2.bf16.msra.mxu0 0
    %128 = vmatprep.subr.bf16.mxu0 0
    %129 = vmatpush2.bf16.msra.mxu0 0
    %130 = vmatprep.subr.bf16.mxu0 0
    %131 = vmatpush2.bf16.msra.mxu0 0
    %132 = vmatprep.subr.bf16.mxu0 0
    %133 = vmatpush2.bf16.msra.mxu0 0
    %134 = vmatprep.subr.bf16.mxu0 0
    %135 = vmatpush2.bf16.msra.mxu0 0
    %136 = vmatprep.subr.bf16.mxu0 0
    %137 = vmatpush2.bf16.msra.mxu0 0
    %138 = vmatprep.subr.bf16.mxu0 0
    %139 = vmatpush2.bf16.msra.mxu0 0
    %140 = vmatprep.subr.bf16.mxu0 0
    %141 = vmatpush2.bf16.msra.mxu0 0
    %142 = vmatprep.mubr.bf16.mxu0 0
    %143 = vmatmul.mubr.bf16.gmra.mxu0 %v95
    %v144 = vpop.f32.mrf.mxu0
    %v145 = vadd.f32 0.0, %v144
    %v146 = vpop.f32.mrf.mxu0
    %v147 = vpop.f32.mrf.mxu0
    %v148 = vadd.f32 0.0, %v147
    %v149 = vpop.f32.mrf.mxu0
    %150 = vmatprep.mubr.bf16.mxu0 0
    %151 = vmatmul.mubr.bf16.gmra.mxu0 %v98
    %v152 = vpop.f32.mrf.mxu0
    %v153 = vadd.f32 0.0, %v152
    %v154 = vpop.f32.mrf.mxu0
    %v155 = vpop.f32.mrf.mxu0
    %v156 = vadd.f32 0.0, %v155
    %v157 = vpop.f32.mrf.mxu0
    %158 = vmatprep.mubr.bf16.mxu0 0
    %159 = vmatmul.mubr.bf16.gmra.mxu0 %v101
    %v160 = vpop.f32.mrf.mxu0
    %v161 = vadd.f32 0.0, %v160
    %v162 = vpop.f32.mrf.mxu0
    %v163 = vpop.f32.mrf.mxu0
    %v164 = vadd.f32 0.0, %v163
    %v165 = vpop.f32.mrf.mxu0
    %166 = vmatprep.mubr.bf16.mxu0 0
    %167 = vmatmul.mubr.bf16.gmra.mxu0 %v104
    %v168 = vpop.f32.mrf.mxu0
    %v169 = vadd.f32 0.0, %v168
    %v170 = vpop.f32.mrf.mxu0
    %v171 = vpop.f32.mrf.mxu0
    %v172 = vadd.f32 0.0, %v171
    %v173 = vpop.f32.mrf.mxu0
    %174 = vdwg.mxu0
    %175 = vst [vmem:[#allocation4] sm:$0xff] %v145
    %176 = vst [vmem:[#allocation4 + $0x8] sm:$0xff] %v148
    %177 = vst [vmem:[#allocation4 + $0x10] sm:$0xff] %v153
    %178 = vst [vmem:[#allocation4 + $0x18] sm:$0xff] %v156
    %179 = vst [vmem:[#allocation4 + $0x20] sm:$0xff] %v161
    %180 = vst [vmem:[#allocation4 + $0x28] sm:$0xff] %v164
    %181 = vst [vmem:[#allocation4 + $0x30] sm:$0xff] %v169
    %182 = vst [vmem:[#allocation4 + $0x38] sm:$0xff] %v172
    %v183 = vld [vmem:[%s1] sm:$0xf]
    %v184 = vld [vmem:[%s1 + $0x4] sm:$0xf]
    %v185 = vld [vmem:[#allocation2] sm:$0xff]
    %v186 = vld [vmem:[#allocation2 + $0x8] sm:$0xff]
    %v187 = vld [vmem:[#allocation3] sm:$0xff]
    %v188 = vld [vmem:[#allocation3 + $0x8] sm:$0xff]
    %v189 = vpack.c.bf16 %v186, %v185
    %v192 = vunpack.c.l.b16 %v183
    %v193 = vunpack.c.l.b16 %v184
    %v194 = vpack.c.b16 %v193, %v192
    %vm195 = vcmask 130048
    %v197 = vsel %vm195, %v194, 0
    %199 = vmatprep.subr.bf16.mxu0 0
    %200 = vmatpush1.bf16.msra.mxu0 0
    %201 = vmatprep.subr.bf16.mxu0 0
    %202 = vmatpush1.bf16.msra.mxu0 0
    %203 = vmatprep.subr.bf16.mxu0 0
    %204 = vmatpush1.bf16.msra.mxu0 0
    %205 = vmatprep.subr.bf16.mxu0 0
    %206 = vmatpush1.bf16.msra.mxu0 0
    %207 = vmatprep.subr.bf16.mxu0 0
    %208 = vmatpush1.bf16.msra.mxu0 0
    %209 = vmatprep.subr.bf16.mxu0 0
    %210 = vmatpush1.bf16.msra.mxu0 0
    %211 = vmatprep.subr.bf16.mxu0 0
    %212 = vmatpush1.bf16.msra.mxu0 0
    %213 = vmatprep.subr.bf16.mxu0 0
    %214 = vmatpush1.bf16.msra.mxu0 %v189
    %215 = vmatprep.subr.bf16.mxu0 0
    %216 = vmatpush2.bf16.msra.mxu0 0
    %217 = vmatprep.subr.bf16.mxu0 0
    %218 = vmatpush2.bf16.msra.mxu0 0
    %219 = vmatprep.subr.bf16.mxu0 0
    %220 = vmatpush2.bf16.msra.mxu0 0
    %221 = vmatprep.subr.bf16.mxu0 0
    %222 = vmatpush2.bf16.msra.mxu0 0
    %223 = vmatprep.subr.bf16.mxu0 0
    %224 = vmatpush2.bf16.msra.mxu0 0
    %225 = vmatprep.subr.bf16.mxu0 0
    %226 = vmatpush2.bf16.msra.mxu0 0
    %227 = vmatprep.subr.bf16.mxu0 0
    %228 = vmatpush2.bf16.msra.mxu0 0
    %229 = vmatprep.subr.bf16.mxu0 0
    %230 = vmatpush2.bf16.msra.mxu0 0
    %231 = vmatprep.mubr.bf16.mxu0 0
    %232 = vmatmul.mubr.bf16.gmra.mxu0 %v197
    %v233 = vpop.f32.mrf.mxu0
    %v234 = vadd.f32 0.0, %v233
    %v235 = vpop.f32.mrf.mxu0
    %v236 = vpop.f32.mrf.mxu0
    %v237 = vadd.f32 0.0, %v236
    %v238 = vpop.f32.mrf.mxu0
    %239 = vdwg.mxu0
    %v240 = vpack.c.bf16 %v237, %v234
    %241 = vmatprep.subr.bf16.mxu0 0
    %242 = vmatpush1.bf16.msra.mxu0 0
    %243 = vmatprep.subr.bf16.mxu0 0
    %244 = vmatpush1.bf16.msra.mxu0 0
    %245 = vmatprep.subr.bf16.mxu0 0
    %246 = vmatpush1.bf16.msra.mxu0 0
    %247 = vmatprep.subr.bf16.mxu0 0
    %248 = vmatpush1.bf16.msra.mxu0 0
    %249 = vmatprep.subr.bf16.mxu0 0
    %250 = vmatpush1.bf16.msra.mxu0 0
    %251 = vmatprep.subr.bf16.mxu0 0
    %252 = vmatpush1.bf16.msra.mxu0 0
    %253 = vmatprep.subr.bf16.mxu0 0
    %254 = vmatpush1.bf16.msra.mxu0 0
    %255 = vmatprep.subr.bf16.mxu0 0
    %256 = vmatpush1.bf16.msra.mxu0 %v240
    %257 = vmatprep.subr.bf16.mxu0 0
    %258 = vmatpush2.bf16.msra.mxu0 0
    %259 = vmatprep.subr.bf16.mxu0 0
    %260 = vmatpush2.bf16.msra.mxu0 0
    %261 = vmatprep.subr.bf16.mxu0 0
    %262 = vmatpush2.bf16.msra.mxu0 0
    %263 = vmatprep.subr.bf16.mxu0 0
    %264 = vmatpush2.bf16.msra.mxu0 0
    %265 = vmatprep.subr.bf16.mxu0 0
    %266 = vmatpush2.bf16.msra.mxu0 0
    %267 = vmatprep.subr.bf16.mxu0 0
    %268 = vmatpush2.bf16.msra.mxu0 0
    %269 = vmatprep.subr.bf16.mxu0 0
    %270 = vmatpush2.bf16.msra.mxu0 0
    %271 = vmatprep.subr.bf16.mxu0 0
    %272 = vmatpush2.bf16.msra.mxu0 0
    %273 = vmatprep.mubr.bf16.mxu0 0
    %274 = vmatmul.mubr.bf16.gmra.mxu0 %v197
    %v275 = vpop.f32.mrf.mxu0
    %v276 = vadd.f32 0.0, %v275
    %v277 = vpop.f32.mrf.mxu0
    %v278 = vpop.f32.mrf.mxu0
    %v279 = vadd.f32 0.0, %v278
    %v280 = vpop.f32.mrf.mxu0
    %281 = vdwg.mxu0
    %v282 = vmul.f32 %v276, 2.0
    %v283 = vmul.f32 %v279, 2.0
    %v284 = vsub.f32 %v282, %v185
    %v285 = vsub.f32 %v283, %v186
    %288 = vrot.lane.b32.xlu0 %v234, 32
    %v289 = vpop.permute.xlu0 %288
    %290 = vrot.lane.b32.xlu0 %v237, 32
    %v291 = vpop.permute.xlu0 %290
    %296 = vrot.lane.b32.xlu0 %v284, 64
    %v297 = vpop.permute.xlu0 %296
    %298 = vrot.lane.b32.xlu0 %v285, 64
    %v299 = vpop.permute.xlu0 %298
    %vm302 = vcmask 261120
    %v303 = vsel %vm302, %v185, %v289
    %v304 = vsel %vm302, %v186, %v291
    %vm305 = vcmask 523264
    %v306 = vsel %vm305, %v303, %v297
    %v307 = vsel %vm305, %v304, %v299
    %v308 = vpack.c.bf16 %v307, %v306
    %v309 = vld [vmem:[#allocation4] sm:$0xff]
    %v310 = vld [vmem:[#allocation4 + $0x8] sm:$0xff]
    %v323 = vunpack.c.l.b16 %v46
    %v324 = vunpack.c.l.b16 %v47
    %v325 = vunpack.c.l.b16 %v48
    %v326 = vunpack.c.l.b16 %v49
    %v327 = vunpack.c.l.b16 %v50
    %v328 = vunpack.c.l.b16 %v51
    %v329 = vunpack.c.l.b16 %v52
    %v330 = vunpack.c.l.b16 %v53
    %v331 = vunpack.c.l.b16 %v54
    %v332 = vunpack.c.l.b16 %v55
    %v333 = vunpack.c.l.b16 %v56
    %v334 = vunpack.c.l.b16 %v57
    %v335 = vpack.c.b16 %v324, %v323
    %v336 = vpack.c.b16 %v326, %v325
    %v337 = vpack.c.b16 %v328, %v327
    %v338 = vpack.c.b16 %v330, %v329
    %v339 = vpack.c.b16 %v332, %v331
    %v340 = vpack.c.b16 %v334, %v333
    %vm347 = vcmask 785408
    %v349 = vsel %vm347, %v308, 0
    %351 = vmatprep.subr.bf16.mxu0 0
    %352 = vmatpush1.bf16.msra.mxu0 0
    %353 = vmatprep.subr.bf16.mxu0 0
    %354 = vmatpush1.bf16.msra.mxu0 0
    %355 = vmatprep.subr.bf16.mxu0 0
    %356 = vmatpush1.bf16.msra.mxu0 %v340
    %357 = vmatprep.subr.bf16.mxu0 0
    %358 = vmatpush1.bf16.msra.mxu0 %v339
    %359 = vmatprep.subr.bf16.mxu0 0
    %360 = vmatpush1.bf16.msra.mxu0 %v338
    %361 = vmatprep.subr.bf16.mxu0 0
    %362 = vmatpush1.bf16.msra.mxu0 %v337
    %363 = vmatprep.subr.bf16.mxu0 0
    %364 = vmatpush1.bf16.msra.mxu0 %v336
    %365 = vmatprep.subr.bf16.mxu0 0
    %366 = vmatpush1.bf16.msra.mxu0 %v335
    %367 = vmatprep.subr.bf16.mxu0 0
    %368 = vmatpush2.bf16.msra.mxu0 0
    %369 = vmatprep.subr.bf16.mxu0 0
    %370 = vmatpush2.bf16.msra.mxu0 0
    %371 = vmatprep.subr.bf16.mxu0 0
    %372 = vmatpush2.bf16.msra.mxu0 0
    %373 = vmatprep.subr.bf16.mxu0 0
    %374 = vmatpush2.bf16.msra.mxu0 0
    %375 = vmatprep.subr.bf16.mxu0 0
    %376 = vmatpush2.bf16.msra.mxu0 0
    %377 = vmatprep.subr.bf16.mxu0 0
    %378 = vmatpush2.bf16.msra.mxu0 0
    %379 = vmatprep.subr.bf16.mxu0 0
    %380 = vmatpush2.bf16.msra.mxu0 0
    %381 = vmatprep.subr.bf16.mxu0 0
    %382 = vmatpush2.bf16.msra.mxu0 0
    %383 = vmatprep.mubr.bf16.mxu0 0
    %384 = vmatmul.mubr.bf16.gmra.mxu0 %v349
    %v385 = vpop.f32.mrf.mxu0
    %v386 = vadd.f32 0.0, %v385
    %v387 = vpop.f32.mrf.mxu0
    %v388 = vpop.f32.mrf.mxu0
    %v389 = vadd.f32 0.0, %v388
    %v390 = vpop.f32.mrf.mxu0
    %391 = vdwg.mxu0
    %v392 = vadd.f32 %v309, %v386
    %v393 = vadd.f32 %v310, %v389
    %v394 = vadd.f32 %v392, %v63
    %v395 = vadd.f32 %v393, %v63
    %v396 = vxor.u32 %v394, 2147483648
    %v397 = vxor.u32 %v395, 2147483648
    %v398 = vmul.f32 %v396, 1.442695
    %v399 = vpow.pop %v398
    %v400 = vmul.f32 %v397, 1.442695
    %v401 = vpow.pop %v400
    %v402 = vadd.f32 %v399, 1.0
    %v403 = vadd.f32 %v401, 1.0
    %v404 = vrcp.pop %v402
    %v405 = vmul.f32 1.0, %v404
    %v406 = vrcp.pop %v403
    %v407 = vmul.f32 1.0, %v406
    %v408 = vtanh.pop %v394
    %v409 = vtanh.pop %v395
    %412 = vrot.lane.b32.xlu0 %v187, 32
    %v413 = vpop.permute.xlu0 %412
    %414 = vrot.lane.b32.xlu0 %v188, 32
    %v415 = vpop.permute.xlu0 %414
    %v418 = vmul.f32 %v405, %v413
    %v419 = vmul.f32 %v407, %v415
    %422 = vrot.lane.b32.xlu0 %v408, 64
    %v423 = vpop.permute.xlu0 %422
    %424 = vrot.lane.b32.xlu0 %v409, 64
    %v425 = vpop.permute.xlu0 %424
    %v428 = vmul.f32 %v405, %v423
    %v429 = vmul.f32 %v407, %v425
    %432 = vrot.lane.b32.xlu0 %v428, 32
    %v433 = vpop.permute.xlu0 %432
    %434 = vrot.lane.b32.xlu0 %v429, 32
    %v435 = vpop.permute.xlu0 %434
    %v438 = vadd.f32 %v418, %v433
    %v439 = vadd.f32 %v419, %v435
    %v440 = vtanh.pop %v438
    %v441 = vtanh.pop %v439
    %444 = vrot.lane.b32.xlu0 %v440, 64
    %v445 = vpop.permute.xlu0 %444
    %446 = vrot.lane.b32.xlu0 %v441, 64
    %v447 = vpop.permute.xlu0 %446
    %v450 = vmul.f32 %v405, %v445
    %v451 = vmul.f32 %v407, %v447
    %454 = vrot.lane.b32.xlu0 %v450, 32
    %v455 = vpop.permute.xlu0 %454
    %456 = vrot.lane.b32.xlu0 %v451, 32
    %v457 = vpop.permute.xlu0 %456
    %460 = vst.msk [vmem:[#allocation2] sm:$0xff] %vm302, %v455
    %461 = vst.msk [vmem:[#allocation2 + $0x8] sm:$0xff] %vm302, %v457
    %464 = vrot.lane.b32.xlu0 %v438, 96
    %v465 = vpop.permute.xlu0 %464
    %466 = vrot.lane.b32.xlu0 %v439, 96
    %v467 = vpop.permute.xlu0 %466
    %470 = vst.msk [vmem:[#allocation3] sm:$0xff] %vm302, %v465
    %471 = vst.msk [vmem:[#allocation3 + $0x8] sm:$0xff] %vm302, %v467
    %472 = vst.msk [vmem:[#allocation8] sm:$0xff] %vm302, %v455
    %473 = vst.msk [vmem:[#allocation8 + $0x8] sm:$0xff] %vm302, %v457
    %s474 = scalar_lea.vmem %s1, 8
    %v475 = vld [vmem:[%s474] sm:$0xf]
    %v476 = vld [vmem:[%s474 + $0x4] sm:$0xf]
    %v477 = vld [vmem:[#allocation2] sm:$0xff]
    %v478 = vld [vmem:[#allocation2 + $0x8] sm:$0xff]
    %v479 = vld [vmem:[#allocation3] sm:$0xff]
    %v480 = vld [vmem:[#allocation3 + $0x8] sm:$0xff]
    %v481 = vpack.c.bf16 %v478, %v477
    %v484 = vunpack.c.l.b16 %v475
    %v485 = vunpack.c.l.b16 %v476
    %v486 = vpack.c.b16 %v485, %v484
    %v488 = vsel %vm195, %v486, 0
    %490 = vmatprep.subr.bf16.mxu0 0
    %491 = vmatpush1.bf16.msra.mxu0 0
    %492 = vmatprep.subr.bf16.mxu0 0
    %493 = vmatpush1.bf16.msra.mxu0 0
    %494 = vmatprep.subr.bf16.mxu0 0
    %495 = vmatpush1.bf16.msra.mxu0 0
    %496 = vmatprep.subr.bf16.mxu0 0
    %497 = vmatpush1.bf16.msra.mxu0 0
    %498 = vmatprep.subr.bf16.mxu0 0
    %499 = vmatpush1.bf16.msra.mxu0 0
    %500 = vmatprep.subr.bf16.mxu0 0
    %501 = vmatpush1.bf16.msra.mxu0 0
    %502 = vmatprep.subr.bf16.mxu0 0
    %503 = vmatpush1.bf16.msra.mxu0 0
    %504 = vmatprep.subr.bf16.mxu0 0
    %505 = vmatpush1.bf16.msra.mxu0 %v481
    %506 = vmatprep.subr.bf16.mxu0 0
    %507 = vmatpush2.bf16.msra.mxu0 0
    %508 = vmatprep.subr.bf16.mxu0 0
    %509 = vmatpush2.bf16.msra.mxu0 0
    %510 = vmatprep.subr.bf16.mxu0 0
    %511 = vmatpush2.bf16.msra.mxu0 0
    %512 = vmatprep.subr.bf16.mxu0 0
    %513 = vmatpush2.bf16.msra.mxu0 0
    %514 = vmatprep.subr.bf16.mxu0 0
    %515 = vmatpush2.bf16.msra.mxu0 0
    %516 = vmatprep.subr.bf16.mxu0 0
    %517 = vmatpush2.bf16.msra.mxu0 0
    %518 = vmatprep.subr.bf16.mxu0 0
    %519 = vmatpush2.bf16.msra.mxu0 0
    %520 = vmatprep.subr.bf16.mxu0 0
    %521 = vmatpush2.bf16.msra.mxu0 0
    %522 = vmatprep.mubr.bf16.mxu0 0
    %523 = vmatmul.mubr.bf16.gmra.mxu0 %v488
    %v524 = vpop.f32.mrf.mxu0
    %v525 = vadd.f32 0.0, %v524
    %v526 = vpop.f32.mrf.mxu0
    %v527 = vpop.f32.mrf.mxu0
    %v528 = vadd.f32 0.0, %v527
    %v529 = vpop.f32.mrf.mxu0
    %530 = vdwg.mxu0
    %v531 = vpack.c.bf16 %v528, %v525
    %532 = vmatprep.subr.bf16.mxu0 0
    %533 = vmatpush1.bf16.msra.mxu0 0
    %534 = vmatprep.subr.bf16.mxu0 0
    %535 = vmatpush1.bf16.msra.mxu0 0
    %536 = vmatprep.subr.bf16.mxu0 0
    %537 = vmatpush1.bf16.msra.mxu0 0
    %538 = vmatprep.subr.bf16.mxu0 0
    %539 = vmatpush1.bf16.msra.mxu0 0
    %540 = vmatprep.subr.bf16.mxu0 0
    %541 = vmatpush1.bf16.msra.mxu0 0
    %542 = vmatprep.subr.bf16.mxu0 0
    %543 = vmatpush1.bf16.msra.mxu0 0
    %544 = vmatprep.subr.bf16.mxu0 0
    %545 = vmatpush1.bf16.msra.mxu0 0
    %546 = vmatprep.subr.bf16.mxu0 0
    %547 = vmatpush1.bf16.msra.mxu0 %v531
    %548 = vmatprep.subr.bf16.mxu0 0
    %549 = vmatpush2.bf16.msra.mxu0 0
    %550 = vmatprep.subr.bf16.mxu0 0
    %551 = vmatpush2.bf16.msra.mxu0 0
    %552 = vmatprep.subr.bf16.mxu0 0
    %553 = vmatpush2.bf16.msra.mxu0 0
    %554 = vmatprep.subr.bf16.mxu0 0
    %555 = vmatpush2.bf16.msra.mxu0 0
    %556 = vmatprep.subr.bf16.mxu0 0
    %557 = vmatpush2.bf16.msra.mxu0 0
    %558 = vmatprep.subr.bf16.mxu0 0
    %559 = vmatpush2.bf16.msra.mxu0 0
    %560 = vmatprep.subr.bf16.mxu0 0
    %561 = vmatpush2.bf16.msra.mxu0 0
    %562 = vmatprep.subr.bf16.mxu0 0
    %563 = vmatpush2.bf16.msra.mxu0 0
    %564 = vmatprep.mubr.bf16.mxu0 0
    %565 = vmatmul.mubr.bf16.gmra.mxu0 %v488
    %v566 = vpop.f32.mrf.mxu0
    %v567 = vadd.f32 0.0, %v566
    %v568 = vpop.f32.mrf.mxu0
    %v569 = vpop.f32.mrf.mxu0
    %v570 = vadd.f32 0.0, %v569
    %v571 = vpop.f32.mrf.mxu0
    %572 = vdwg.mxu0
    %v573 = vmul.f32 %v567, 2.0
    %v574 = vmul.f32 %v570, 2.0
    %v575 = vsub.f32 %v573, %v477
    %v576 = vsub.f32 %v574, %v478
    %579 = vrot.lane.b32.xlu0 %v525, 32
    %v580 = vpop.permute.xlu0 %579
    %581 = vrot.lane.b32.xlu0 %v528, 32
    %v582 = vpop.permute.xlu0 %581
    %587 = vrot.lane.b32.xlu0 %v575, 64
    %v588 = vpop.permute.xlu0 %587
    %589 = vrot.lane.b32.xlu0 %v576, 64
    %v590 = vpop.permute.xlu0 %589
    %v593 = vsel %vm302, %v477, %v580
    %v594 = vsel %vm302, %v478, %v582
    %v595 = vsel %vm305, %v593, %v588
    %v596 = vsel %vm305, %v594, %v590
    %v597 = vpack.c.bf16 %v596, %v595
    %s598 = scalar_lea.vmem [#allocation4], 16
    %v599 = vld [vmem:[%s598] sm:$0xff]
    %v600 = vld [vmem:[%s598 + $0x8] sm:$0xff]
    %v602 = vsel %vm347, %v597, 0
    %604 = vmatprep.subr.bf16.mxu0 0
    %605 = vmatpush1.bf16.msra.mxu0 0
    %606 = vmatprep.subr.bf16.mxu0 0
    %607 = vmatpush1.bf16.msra.mxu0 0
    %608 = vmatprep.subr.bf16.mxu0 0
    %609 = vmatpush1.bf16.msra.mxu0 %v340
    %610 = vmatprep.subr.bf16.mxu0 0
    %611 = vmatpush1.bf16.msra.mxu0 %v339
    %612 = vmatprep.subr.bf16.mxu0 0
    %613 = vmatpush1.bf16.msra.mxu0 %v338
    %614 = vmatprep.subr.bf16.mxu0 0
    %615 = vmatpush1.bf16.msra.mxu0 %v337
    %616 = vmatprep.subr.bf16.mxu0 0
    %617 = vmatpush1.bf16.msra.mxu0 %v336
    %618 = vmatprep.subr.bf16.mxu0 0
    %619 = vmatpush1.bf16.msra.mxu0 %v335
    %620 = vmatprep.subr.bf16.mxu0 0
    %621 = vmatpush2.bf16.msra.mxu0 0
    %622 = vmatprep.subr.bf16.mxu0 0
    %623 = vmatpush2.bf16.msra.mxu0 0
    %624 = vmatprep.subr.bf16.mxu0 0
    %625 = vmatpush2.bf16.msra.mxu0 0
    %626 = vmatprep.subr.bf16.mxu0 0
    %627 = vmatpush2.bf16.msra.mxu0 0
    %628 = vmatprep.subr.bf16.mxu0 0
    %629 = vmatpush2.bf16.msra.mxu0 0
    %630 = vmatprep.subr.bf16.mxu0 0
    %631 = vmatpush2.bf16.msra.mxu0 0
    %632 = vmatprep.subr.bf16.mxu0 0
    %633 = vmatpush2.bf16.msra.mxu0 0
    %634 = vmatprep.subr.bf16.mxu0 0
    %635 = vmatpush2.bf16.msra.mxu0 0
    %636 = vmatprep.mubr.bf16.mxu0 0
    %637 = vmatmul.mubr.bf16.gmra.mxu0 %v602
    %v638 = vpop.f32.mrf.mxu0
    %v639 = vadd.f32 0.0, %v638
    %v640 = vpop.f32.mrf.mxu0
    %v641 = vpop.f32.mrf.mxu0
    %v642 = vadd.f32 0.0, %v641
    %v643 = vpop.f32.mrf.mxu0
    %644 = vdwg.mxu0
    %v645 = vadd.f32 %v599, %v639
    %v646 = vadd.f32 %v600, %v642
    %v647 = vadd.f32 %v645, %v63
    %v648 = vadd.f32 %v646, %v63
    %v649 = vxor.u32 %v647, 2147483648
    %v650 = vxor.u32 %v648, 2147483648
    %v651 = vmul.f32 %v649, 1.442695
    %v652 = vpow.pop %v651
    %v653 = vmul.f32 %v650, 1.442695
    %v654 = vpow.pop %v653
    %v655 = vadd.f32 %v652, 1.0
    %v656 = vadd.f32 %v654, 1.0
    %v657 = vrcp.pop %v655
    %v658 = vmul.f32 1.0, %v657
    %v659 = vrcp.pop %v656
    %v660 = vmul.f32 1.0, %v659
    %v661 = vtanh.pop %v647
    %v662 = vtanh.pop %v648
    %665 = vrot.lane.b32.xlu0 %v479, 32
    %v666 = vpop.permute.xlu0 %665
    %667 = vrot.lane.b32.xlu0 %v480, 32
    %v668 = vpop.permute.xlu0 %667
    %v671 = vmul.f32 %v658, %v666
    %v672 = vmul.f32 %v660, %v668
    %675 = vrot.lane.b32.xlu0 %v661, 64
    %v676 = vpop.permute.xlu0 %675
    %677 = vrot.lane.b32.xlu0 %v662, 64
    %v678 = vpop.permute.xlu0 %677
    %v681 = vmul.f32 %v658, %v676
    %v682 = vmul.f32 %v660, %v678
    %685 = vrot.lane.b32.xlu0 %v681, 32
    %v686 = vpop.permute.xlu0 %685
    %687 = vrot.lane.b32.xlu0 %v682, 32
    %v688 = vpop.permute.xlu0 %687
    %v691 = vadd.f32 %v671, %v686
    %v692 = vadd.f32 %v672, %v688
    %v693 = vtanh.pop %v691
    %v694 = vtanh.pop %v692
    %697 = vrot.lane.b32.xlu0 %v693, 64
    %v698 = vpop.permute.xlu0 %697
    %699 = vrot.lane.b32.xlu0 %v694, 64
    %v700 = vpop.permute.xlu0 %699
    %v703 = vmul.f32 %v658, %v698
    %v704 = vmul.f32 %v660, %v700
    %707 = vrot.lane.b32.xlu0 %v703, 32
    %v708 = vpop.permute.xlu0 %707
    %709 = vrot.lane.b32.xlu0 %v704, 32
    %v710 = vpop.permute.xlu0 %709
    %713 = vst.msk [vmem:[#allocation2] sm:$0xff] %vm302, %v708
    %714 = vst.msk [vmem:[#allocation2 + $0x8] sm:$0xff] %vm302, %v710
    %717 = vrot.lane.b32.xlu0 %v691, 96
    %v718 = vpop.permute.xlu0 %717
    %719 = vrot.lane.b32.xlu0 %v692, 96
    %v720 = vpop.permute.xlu0 %719
    %723 = vst.msk [vmem:[#allocation3] sm:$0xff] %vm302, %v718
    %724 = vst.msk [vmem:[#allocation3 + $0x8] sm:$0xff] %vm302, %v720
    %s725 = scalar_lea.vmem [#allocation8], 16
    %726 = vst.msk [vmem:[%s725] sm:$0xff] %vm302, %v708
    %727 = vst.msk [vmem:[%s725 + $0x8] sm:$0xff] %vm302, %v710
    %s728 = scalar_lea.vmem %s1, 16
    %v729 = vld [vmem:[%s728] sm:$0xf]
    %v730 = vld [vmem:[%s728 + $0x4] sm:$0xf]
    %v731 = vld [vmem:[#allocation2] sm:$0xff]
    %v732 = vld [vmem:[#allocation2 + $0x8] sm:$0xff]
    %v733 = vld [vmem:[#allocation3] sm:$0xff]
    %v734 = vld [vmem:[#allocation3 + $0x8] sm:$0xff]
    %v735 = vpack.c.bf16 %v732, %v731
    %v738 = vunpack.c.l.b16 %v729
    %v739 = vunpack.c.l.b16 %v730
    %v740 = vpack.c.b16 %v739, %v738
    %v742 = vsel %vm195, %v740, 0
    %744 = vmatprep.subr.bf16.mxu0 0
    %745 = vmatpush1.bf16.msra.mxu0 0
    %746 = vmatprep.subr.bf16.mxu0 0
    %747 = vmatpush1.bf16.msra.mxu0 0
    %748 = vmatprep.subr.bf16.mxu0 0
    %749 = vmatpush1.bf16.msra.mxu0 0
    %750 = vmatprep.subr.bf16.mxu0 0
    %751 = vmatpush1.bf16.msra.mxu0 0
    %752 = vmatprep.subr.bf16.mxu0 0
    %753 = vmatpush1.bf16.msra.mxu0 0
    %754 = vmatprep.subr.bf16.mxu0 0
    %755 = vmatpush1.bf16.msra.mxu0 0
    %756 = vmatprep.subr.bf16.mxu0 0
    %757 = vmatpush1.bf16.msra.mxu0 0
    %758 = vmatprep.subr.bf16.mxu0 0
    %759 = vmatpush1.bf16.msra.mxu0 %v735
    %760 = vmatprep.subr.bf16.mxu0 0
    %761 = vmatpush2.bf16.msra.mxu0 0
    %762 = vmatprep.subr.bf16.mxu0 0
    %763 = vmatpush2.bf16.msra.mxu0 0
    %764 = vmatprep.subr.bf16.mxu0 0
    %765 = vmatpush2.bf16.msra.mxu0 0
    %766 = vmatprep.subr.bf16.mxu0 0
    %767 = vmatpush2.bf16.msra.mxu0 0
    %768 = vmatprep.subr.bf16.mxu0 0
    %769 = vmatpush2.bf16.msra.mxu0 0
    %770 = vmatprep.subr.bf16.mxu0 0
    %771 = vmatpush2.bf16.msra.mxu0 0
    %772 = vmatprep.subr.bf16.mxu0 0
    %773 = vmatpush2.bf16.msra.mxu0 0
    %774 = vmatprep.subr.bf16.mxu0 0
    %775 = vmatpush2.bf16.msra.mxu0 0
    %776 = vmatprep.mubr.bf16.mxu0 0
    %777 = vmatmul.mubr.bf16.gmra.mxu0 %v742
    %v778 = vpop.f32.mrf.mxu0
    %v779 = vadd.f32 0.0, %v778
    %v780 = vpop.f32.mrf.mxu0
    %v781 = vpop.f32.mrf.mxu0
    %v782 = vadd.f32 0.0, %v781
    %v783 = vpop.f32.mrf.mxu0
    %784 = vdwg.mxu0
    %v785 = vpack.c.bf16 %v782, %v779
    %786 = vmatprep.subr.bf16.mxu0 0
    %787 = vmatpush1.bf16.msra.mxu0 0
    %788 = vmatprep.subr.bf16.mxu0 0
    %789 = vmatpush1.bf16.msra.mxu0 0
    %790 = vmatprep.subr.bf16.mxu0 0
    %791 = vmatpush1.bf16.msra.mxu0 0
    %792 = vmatprep.subr.bf16.mxu0 0
    %793 = vmatpush1.bf16.msra.mxu0 0
    %794 = vmatprep.subr.bf16.mxu0 0
    %795 = vmatpush1.bf16.msra.mxu0 0
    %796 = vmatprep.subr.bf16.mxu0 0
    %797 = vmatpush1.bf16.msra.mxu0 0
    %798 = vmatprep.subr.bf16.mxu0 0
    %799 = vmatpush1.bf16.msra.mxu0 0
    %800 = vmatprep.subr.bf16.mxu0 0
    %801 = vmatpush1.bf16.msra.mxu0 %v785
    %802 = vmatprep.subr.bf16.mxu0 0
    %803 = vmatpush2.bf16.msra.mxu0 0
    %804 = vmatprep.subr.bf16.mxu0 0
    %805 = vmatpush2.bf16.msra.mxu0 0
    %806 = vmatprep.subr.bf16.mxu0 0
    %807 = vmatpush2.bf16.msra.mxu0 0
    %808 = vmatprep.subr.bf16.mxu0 0
    %809 = vmatpush2.bf16.msra.mxu0 0
    %810 = vmatprep.subr.bf16.mxu0 0
    %811 = vmatpush2.bf16.msra.mxu0 0
    %812 = vmatprep.subr.bf16.mxu0 0
    %813 = vmatpush2.bf16.msra.mxu0 0
    %814 = vmatprep.subr.bf16.mxu0 0
    %815 = vmatpush2.bf16.msra.mxu0 0
    %816 = vmatprep.subr.bf16.mxu0 0
    %817 = vmatpush2.bf16.msra.mxu0 0
    %818 = vmatprep.mubr.bf16.mxu0 0
    %819 = vmatmul.mubr.bf16.gmra.mxu0 %v742
    %v820 = vpop.f32.mrf.mxu0
    %v821 = vadd.f32 0.0, %v820
    %v822 = vpop.f32.mrf.mxu0
    %v823 = vpop.f32.mrf.mxu0
    %v824 = vadd.f32 0.0, %v823
    %v825 = vpop.f32.mrf.mxu0
    %826 = vdwg.mxu0
    %v827 = vmul.f32 %v821, 2.0
    %v828 = vmul.f32 %v824, 2.0
    %v829 = vsub.f32 %v827, %v731
    %v830 = vsub.f32 %v828, %v732
    %833 = vrot.lane.b32.xlu0 %v779, 32
    %v834 = vpop.permute.xlu0 %833
    %835 = vrot.lane.b32.xlu0 %v782, 32
    %v836 = vpop.permute.xlu0 %835
    %841 = vrot.lane.b32.xlu0 %v829, 64
    %v842 = vpop.permute.xlu0 %841
    %843 = vrot.lane.b32.xlu0 %v830, 64
    %v844 = vpop.permute.xlu0 %843
    %v847 = vsel %vm302, %v731, %v834
    %v848 = vsel %vm302, %v732, %v836
    %v849 = vsel %vm305, %v847, %v842
    %v850 = vsel %vm305, %v848, %v844
    %v851 = vpack.c.bf16 %v850, %v849
    %s852 = scalar_lea.vmem [#allocation4], 32
    %v853 = vld [vmem:[%s852] sm:$0xff]
    %v854 = vld [vmem:[%s852 + $0x8] sm:$0xff]
    %v856 = vsel %vm347, %v851, 0
    %858 = vmatprep.subr.bf16.mxu0 0
    %859 = vmatpush1.bf16.msra.mxu0 0
    %860 = vmatprep.subr.bf16.mxu0 0
    %861 = vmatpush1.bf16.msra.mxu0 0
    %862 = vmatprep.subr.bf16.mxu0 0
    %863 = vmatpush1.bf16.msra.mxu0 %v340
    %864 = vmatprep.subr.bf16.mxu0 0
    %865 = vmatpush1.bf16.msra.mxu0 %v339
    %866 = vmatprep.subr.bf16.mxu0 0
    %867 = vmatpush1.bf16.msra.mxu0 %v338
    %868 = vmatprep.subr.bf16.mxu0 0
    %869 = vmatpush1.bf16.msra.mxu0 %v337
    %870 = vmatprep.subr.bf16.mxu0 0
    %871 = vmatpush1.bf16.msra.mxu0 %v336
    %872 = vmatprep.subr.bf16.mxu0 0
    %873 = vmatpush1.bf16.msra.mxu0 %v335
    %874 = vmatprep.subr.bf16.mxu0 0
    %875 = vmatpush2.bf16.msra.mxu0 0
    %876 = vmatprep.subr.bf16.mxu0 0
    %877 = vmatpush2.bf16.msra.mxu0 0
    %878 = vmatprep.subr.bf16.mxu0 0
    %879 = vmatpush2.bf16.msra.mxu0 0
    %880 = vmatprep.subr.bf16.mxu0 0
    %881 = vmatpush2.bf16.msra.mxu0 0
    %882 = vmatprep.subr.bf16.mxu0 0
    %883 = vmatpush2.bf16.msra.mxu0 0
    %884 = vmatprep.subr.bf16.mxu0 0
    %885 = vmatpush2.bf16.msra.mxu0 0
    %886 = vmatprep.subr.bf16.mxu0 0
    %887 = vmatpush2.bf16.msra.mxu0 0
    %888 = vmatprep.subr.bf16.mxu0 0
    %889 = vmatpush2.bf16.msra.mxu0 0
    %890 = vmatprep.mubr.bf16.mxu0 0
    %891 = vmatmul.mubr.bf16.gmra.mxu0 %v856
    %v892 = vpop.f32.mrf.mxu0
    %v893 = vadd.f32 0.0, %v892
    %v894 = vpop.f32.mrf.mxu0
    %v895 = vpop.f32.mrf.mxu0
    %v896 = vadd.f32 0.0, %v895
    %v897 = vpop.f32.mrf.mxu0
    %898 = vdwg.mxu0
    %v899 = vadd.f32 %v853, %v893
    %v900 = vadd.f32 %v854, %v896
    %v901 = vadd.f32 %v899, %v63
    %v902 = vadd.f32 %v900, %v63
    %v903 = vxor.u32 %v901, 2147483648
    %v904 = vxor.u32 %v902, 2147483648
    %v905 = vmul.f32 %v903, 1.442695
    %v906 = vpow.pop %v905
    %v907 = vmul.f32 %v904, 1.442695
    %v908 = vpow.pop %v907
    %v909 = vadd.f32 %v906, 1.0
    %v910 = vadd.f32 %v908, 1.0
    %v911 = vrcp.pop %v909
    %v912 = vmul.f32 1.0, %v911
    %v913 = vrcp.pop %v910
    %v914 = vmul.f32 1.0, %v913
    %v915 = vtanh.pop %v901
    %v916 = vtanh.pop %v902
    %919 = vrot.lane.b32.xlu0 %v733, 32
    %v920 = vpop.permute.xlu0 %919
    %921 = vrot.lane.b32.xlu0 %v734, 32
    %v922 = vpop.permute.xlu0 %921
    %v925 = vmul.f32 %v912, %v920
    %v926 = vmul.f32 %v914, %v922
    %929 = vrot.lane.b32.xlu0 %v915, 64
    %v930 = vpop.permute.xlu0 %929
    %931 = vrot.lane.b32.xlu0 %v916, 64
    %v932 = vpop.permute.xlu0 %931
    %v935 = vmul.f32 %v912, %v930
    %v936 = vmul.f32 %v914, %v932
    %939 = vrot.lane.b32.xlu0 %v935, 32
    %v940 = vpop.permute.xlu0 %939
    %941 = vrot.lane.b32.xlu0 %v936, 32
    %v942 = vpop.permute.xlu0 %941
    %v945 = vadd.f32 %v925, %v940
    %v946 = vadd.f32 %v926, %v942
    %v947 = vtanh.pop %v945
    %v948 = vtanh.pop %v946
    %951 = vrot.lane.b32.xlu0 %v947, 64
    %v952 = vpop.permute.xlu0 %951
    %953 = vrot.lane.b32.xlu0 %v948, 64
    %v954 = vpop.permute.xlu0 %953
    %v957 = vmul.f32 %v912, %v952
    %v958 = vmul.f32 %v914, %v954
    %961 = vrot.lane.b32.xlu0 %v957, 32
    %v962 = vpop.permute.xlu0 %961
    %963 = vrot.lane.b32.xlu0 %v958, 32
    %v964 = vpop.permute.xlu0 %963
    %967 = vst.msk [vmem:[#allocation2] sm:$0xff] %vm302, %v962
    %968 = vst.msk [vmem:[#allocation2 + $0x8] sm:$0xff] %vm302, %v964
    %971 = vrot.lane.b32.xlu0 %v945, 96
    %v972 = vpop.permute.xlu0 %971
    %973 = vrot.lane.b32.xlu0 %v946, 96
    %v974 = vpop.permute.xlu0 %973
    %977 = vst.msk [vmem:[#allocation3] sm:$0xff] %vm302, %v972
    %978 = vst.msk [vmem:[#allocation3 + $0x8] sm:$0xff] %vm302, %v974
    %s979 = scalar_lea.vmem [#allocation8], 32
    %980 = vst.msk [vmem:[%s979] sm:$0xff] %vm302, %v962
    %981 = vst.msk [vmem:[%s979 + $0x8] sm:$0xff] %vm302, %v964
    %s982 = scalar_lea.vmem %s1, 24
    %v983 = vld [vmem:[%s982] sm:$0xf]
    %v984 = vld [vmem:[%s982 + $0x4] sm:$0xf]
    %v985 = vld [vmem:[#allocation2] sm:$0xff]
    %v986 = vld [vmem:[#allocation2 + $0x8] sm:$0xff]
    %v987 = vld [vmem:[#allocation3] sm:$0xff]
    %v988 = vld [vmem:[#allocation3 + $0x8] sm:$0xff]
    %v989 = vpack.c.bf16 %v986, %v985
    %v992 = vunpack.c.l.b16 %v983
    %v993 = vunpack.c.l.b16 %v984
    %v994 = vpack.c.b16 %v993, %v992
    %v996 = vsel %vm195, %v994, 0
    %998 = vmatprep.subr.bf16.mxu0 0
    %999 = vmatpush1.bf16.msra.mxu0 0
    %1000 = vmatprep.subr.bf16.mxu0 0
    %1001 = vmatpush1.bf16.msra.mxu0 0
    %1002 = vmatprep.subr.bf16.mxu0 0
    %1003 = vmatpush1.bf16.msra.mxu0 0
    %1004 = vmatprep.subr.bf16.mxu0 0
    %1005 = vmatpush1.bf16.msra.mxu0 0
    %1006 = vmatprep.subr.bf16.mxu0 0
    %1007 = vmatpush1.bf16.msra.mxu0 0
    %1008 = vmatprep.subr.bf16.mxu0 0
    %1009 = vmatpush1.bf16.msra.mxu0 0
    %1010 = vmatprep.subr.bf16.mxu0 0
    %1011 = vmatpush1.bf16.msra.mxu0 0
    %1012 = vmatprep.subr.bf16.mxu0 0
    %1013 = vmatpush1.bf16.msra.mxu0 %v989
    %1014 = vmatprep.subr.bf16.mxu0 0
    %1015 = vmatpush2.bf16.msra.mxu0 0
    %1016 = vmatprep.subr.bf16.mxu0 0
    %1017 = vmatpush2.bf16.msra.mxu0 0
    %1018 = vmatprep.subr.bf16.mxu0 0
    %1019 = vmatpush2.bf16.msra.mxu0 0
    %1020 = vmatprep.subr.bf16.mxu0 0
    %1021 = vmatpush2.bf16.msra.mxu0 0
    %1022 = vmatprep.subr.bf16.mxu0 0
    %1023 = vmatpush2.bf16.msra.mxu0 0
    %1024 = vmatprep.subr.bf16.mxu0 0
    %1025 = vmatpush2.bf16.msra.mxu0 0
    %1026 = vmatprep.subr.bf16.mxu0 0
    %1027 = vmatpush2.bf16.msra.mxu0 0
    %1028 = vmatprep.subr.bf16.mxu0 0
    %1029 = vmatpush2.bf16.msra.mxu0 0
    %1030 = vmatprep.mubr.bf16.mxu0 0
    %1031 = vmatmul.mubr.bf16.gmra.mxu0 %v996
    %v1032 = vpop.f32.mrf.mxu0
    %v1033 = vadd.f32 0.0, %v1032
    %v1034 = vpop.f32.mrf.mxu0
    %v1035 = vpop.f32.mrf.mxu0
    %v1036 = vadd.f32 0.0, %v1035
    %v1037 = vpop.f32.mrf.mxu0
    %1038 = vdwg.mxu0
    %v1039 = vpack.c.bf16 %v1036, %v1033
    %1040 = vmatprep.subr.bf16.mxu0 0
    %1041 = vmatpush1.bf16.msra.mxu0 0
    %1042 = vmatprep.subr.bf16.mxu0 0
    %1043 = vmatpush1.bf16.msra.mxu0 0
    %1044 = vmatprep.subr.bf16.mxu0 0
    %1045 = vmatpush1.bf16.msra.mxu0 0
    %1046 = vmatprep.subr.bf16.mxu0 0
    %1047 = vmatpush1.bf16.msra.mxu0 0
    %1048 = vmatprep.subr.bf16.mxu0 0
    %1049 = vmatpush1.bf16.msra.mxu0 0
    %1050 = vmatprep.subr.bf16.mxu0 0
    %1051 = vmatpush1.bf16.msra.mxu0 0
    %1052 = vmatprep.subr.bf16.mxu0 0
    %1053 = vmatpush1.bf16.msra.mxu0 0
    %1054 = vmatprep.subr.bf16.mxu0 0
    %1055 = vmatpush1.bf16.msra.mxu0 %v1039
    %1056 = vmatprep.subr.bf16.mxu0 0
    %1057 = vmatpush2.bf16.msra.mxu0 0
    %1058 = vmatprep.subr.bf16.mxu0 0
    %1059 = vmatpush2.bf16.msra.mxu0 0
    %1060 = vmatprep.subr.bf16.mxu0 0
    %1061 = vmatpush2.bf16.msra.mxu0 0
    %1062 = vmatprep.subr.bf16.mxu0 0
    %1063 = vmatpush2.bf16.msra.mxu0 0
    %1064 = vmatprep.subr.bf16.mxu0 0
    %1065 = vmatpush2.bf16.msra.mxu0 0
    %1066 = vmatprep.subr.bf16.mxu0 0
    %1067 = vmatpush2.bf16.msra.mxu0 0
    %1068 = vmatprep.subr.bf16.mxu0 0
    %1069 = vmatpush2.bf16.msra.mxu0 0
    %1070 = vmatprep.subr.bf16.mxu0 0
    %1071 = vmatpush2.bf16.msra.mxu0 0
    %1072 = vmatprep.mubr.bf16.mxu0 0
    %1073 = vmatmul.mubr.bf16.gmra.mxu0 %v996
    %v1074 = vpop.f32.mrf.mxu0
    %v1075 = vadd.f32 0.0, %v1074
    %v1076 = vpop.f32.mrf.mxu0
    %v1077 = vpop.f32.mrf.mxu0
    %v1078 = vadd.f32 0.0, %v1077
    %v1079 = vpop.f32.mrf.mxu0
    %1080 = vdwg.mxu0
    %v1081 = vmul.f32 %v1075, 2.0
    %v1082 = vmul.f32 %v1078, 2.0
    %v1083 = vsub.f32 %v1081, %v985
    %v1084 = vsub.f32 %v1082, %v986
    %1087 = vrot.lane.b32.xlu0 %v1033, 32
    %v1088 = vpop.permute.xlu0 %1087
    %1089 = vrot.lane.b32.xlu0 %v1036, 32
    %v1090 = vpop.permute.xlu0 %1089
    %1095 = vrot.lane.b32.xlu0 %v1083, 64
    %v1096 = vpop.permute.xlu0 %1095
    %1097 = vrot.lane.b32.xlu0 %v1084, 64
    %v1098 = vpop.permute.xlu0 %1097
    %v1101 = vsel %vm302, %v985, %v1088
    %v1102 = vsel %vm302, %v986, %v1090
    %v1103 = vsel %vm305, %v1101, %v1096
    %v1104 = vsel %vm305, %v1102, %v1098
    %v1105 = vpack.c.bf16 %v1104, %v1103
    %s1106 = scalar_lea.vmem [#allocation4], 48
    %v1107 = vld [vmem:[%s1106] sm:$0xff]
    %v1108 = vld [vmem:[%s1106 + $0x8] sm:$0xff]
    %v1110 = vsel %vm347, %v1105, 0
    %1112 = vmatprep.subr.bf16.mxu0 0
    %1113 = vmatpush1.bf16.msra.mxu0 0
    %1114 = vmatprep.subr.bf16.mxu0 0
    %1115 = vmatpush1.bf16.msra.mxu0 0
    %1116 = vmatprep.subr.bf16.mxu0 0
    %1117 = vmatpush1.bf16.msra.mxu0 %v340
    %1118 = vmatprep.subr.bf16.mxu0 0
    %1119 = vmatpush1.bf16.msra.mxu0 %v339
    %1120 = vmatprep.subr.bf16.mxu0 0
    %1121 = vmatpush1.bf16.msra.mxu0 %v338
    %1122 = vmatprep.subr.bf16.mxu0 0
    %1123 = vmatpush1.bf16.msra.mxu0 %v337
    %1124 = vmatprep.subr.bf16.mxu0 0
    %1125 = vmatpush1.bf16.msra.mxu0 %v336
    %1126 = vmatprep.subr.bf16.mxu0 0
    %1127 = vmatpush1.bf16.msra.mxu0 %v335
    %1128 = vmatprep.subr.bf16.mxu0 0
    %1129 = vmatpush2.bf16.msra.mxu0 0
    %1130 = vmatprep.subr.bf16.mxu0 0
    %1131 = vmatpush2.bf16.msra.mxu0 0
    %1132 = vmatprep.subr.bf16.mxu0 0
    %1133 = vmatpush2.bf16.msra.mxu0 0
    %1134 = vmatprep.subr.bf16.mxu0 0
    %1135 = vmatpush2.bf16.msra.mxu0 0
    %1136 = vmatprep.subr.bf16.mxu0 0
    %1137 = vmatpush2.bf16.msra.mxu0 0
    %1138 = vmatprep.subr.bf16.mxu0 0
    %1139 = vmatpush2.bf16.msra.mxu0 0
    %1140 = vmatprep.subr.bf16.mxu0 0
    %1141 = vmatpush2.bf16.msra.mxu0 0
    %1142 = vmatprep.subr.bf16.mxu0 0
    %1143 = vmatpush2.bf16.msra.mxu0 0
    %1144 = vmatprep.mubr.bf16.mxu0 0
    %1145 = vmatmul.mubr.bf16.gmra.mxu0 %v1110
    %v1146 = vpop.f32.mrf.mxu0
    %v1147 = vadd.f32 0.0, %v1146
    %v1148 = vpop.f32.mrf.mxu0
    %v1149 = vpop.f32.mrf.mxu0
    %v1150 = vadd.f32 0.0, %v1149
    %v1151 = vpop.f32.mrf.mxu0
    %1152 = vdwg.mxu0
    %v1153 = vadd.f32 %v1107, %v1147
    %v1154 = vadd.f32 %v1108, %v1150
    %v1155 = vadd.f32 %v1153, %v63
    %v1156 = vadd.f32 %v1154, %v63
    %v1157 = vxor.u32 %v1155, 2147483648
    %v1158 = vxor.u32 %v1156, 2147483648
    %v1159 = vmul.f32 %v1157, 1.442695
    %v1160 = vpow.pop %v1159
    %v1161 = vmul.f32 %v1158, 1.442695
    %v1162 = vpow.pop %v1161
    %v1163 = vadd.f32 %v1160, 1.0
    %v1164 = vadd.f32 %v1162, 1.0
    %v1165 = vrcp.pop %v1163
    %v1166 = vmul.f32 1.0, %v1165
    %v1167 = vrcp.pop %v1164
    %v1168 = vmul.f32 1.0, %v1167
    %v1169 = vtanh.pop %v1155
    %v1170 = vtanh.pop %v1156
    %1173 = vrot.lane.b32.xlu0 %v987, 32
    %v1174 = vpop.permute.xlu0 %1173
    %1175 = vrot.lane.b32.xlu0 %v988, 32
    %v1176 = vpop.permute.xlu0 %1175
    %v1179 = vmul.f32 %v1166, %v1174
    %v1180 = vmul.f32 %v1168, %v1176
    %1183 = vrot.lane.b32.xlu0 %v1169, 64
    %v1184 = vpop.permute.xlu0 %1183
    %1185 = vrot.lane.b32.xlu0 %v1170, 64
    %v1186 = vpop.permute.xlu0 %1185
    %v1189 = vmul.f32 %v1166, %v1184
    %v1190 = vmul.f32 %v1168, %v1186
    %1193 = vrot.lane.b32.xlu0 %v1189, 32
    %v1194 = vpop.permute.xlu0 %1193
    %1195 = vrot.lane.b32.xlu0 %v1190, 32
    %v1196 = vpop.permute.xlu0 %1195
    %v1199 = vadd.f32 %v1179, %v1194
    %v1200 = vadd.f32 %v1180, %v1196
    %v1201 = vtanh.pop %v1199
    %v1202 = vtanh.pop %v1200
    %1205 = vrot.lane.b32.xlu0 %v1201, 64
    %v1206 = vpop.permute.xlu0 %1205
    %1207 = vrot.lane.b32.xlu0 %v1202, 64
    %v1208 = vpop.permute.xlu0 %1207
    %v1211 = vmul.f32 %v1166, %v1206
    %v1212 = vmul.f32 %v1168, %v1208
    %1215 = vrot.lane.b32.xlu0 %v1211, 32
    %v1216 = vpop.permute.xlu0 %1215
    %1217 = vrot.lane.b32.xlu0 %v1212, 32
    %v1218 = vpop.permute.xlu0 %1217
    %1221 = vst.msk [vmem:[#allocation2] sm:$0xff] %vm302, %v1216
    %1222 = vst.msk [vmem:[#allocation2 + $0x8] sm:$0xff] %vm302, %v1218
    %1225 = vrot.lane.b32.xlu0 %v1199, 96
    %v1226 = vpop.permute.xlu0 %1225
    %1227 = vrot.lane.b32.xlu0 %v1200, 96
    %v1228 = vpop.permute.xlu0 %1227
    %1231 = vst.msk [vmem:[#allocation3] sm:$0xff] %vm302, %v1226
    %1232 = vst.msk [vmem:[#allocation3 + $0x8] sm:$0xff] %vm302, %v1228
    %s1233 = scalar_lea.vmem [#allocation8], 48
    %1234 = vst.msk [vmem:[%s1233] sm:$0xff] %vm302, %v1216
    %1235 = vst.msk [vmem:[%s1233 + $0x8] sm:$0xff] %vm302, %v1218
    // Predicated region
    $region30: #{tpu_custom_call.1} parent=1 // pred_check
      _
    $region31: #{tpu_custom_call.1} parent=1 // pred_check_branch
      %1237 = sbr.rel (0) target = $region33
    $region32: #{tpu_custom_call.1} parent=1 // pred_region
      %s1239 = ssub.s32 1024, 1024
      %1240 = vsyncadd [#allocation7], %s1239
      %s1241 = sshll.u32 [#allocation8], 4
      %s1242 = int_to_ptr.vmem [resolvable:$true] %s1241
      %1247 = dma.vmem_to_hbm [thread:$0]  %s1242, 1024, %s5, [#allocation7], 128, 128, 8
    $region33: #{tpu_custom_call.1} parent=1 // pred_fallthru
      _
    // Predicated region
    $region34: #{tpu_custom_call.1} parent=1 // pred_check
      _
    $region35: #{tpu_custom_call.1} parent=1 // pred_check_branch
      %1249 = sbr.rel (0) target = $region37
    $region36: #{tpu_custom_call.1} parent=1 // pred_region
      %1250 = dma.done [#allocation7], 1024
    $region37: #{tpu_custom_call.1} parent=1 // pred_fallthru
      _
    %1251 = vsyncpa [#allocation6], 1
    %1252 = vsyncpa [#allocation7], 1

</llo_original>
